<compile_context>
chip_gen: v5e
topology: v5e:2x2
jax: 0.10.0
libtpu: 0.0.40
codegen_flags: <defaults>
</compile_context>

<pallas_src>
import functools
import math

import jax
import jax.numpy as jnp
from jax.experimental import pallas as pl
from jax.experimental.pallas import tpu as pltpu


def _round_up(n, m):
    return ((n + m - 1) // m) * m


# ----------------------------- Pallas kernels ------------------------------ #

def _decoder_stack_kernel(x_ref, mem_ref, pre_w_ref, pre_b_ref,
                          qw_ref, qb_ref, kvw_ref, kvb_ref,
                          ow_ref, ob_ref, ln1g_ref, ln1b_ref,
                          f1w_ref, f1b_ref, f2w_ref, f2b_ref,
                          ln2g_ref, ln2b_ref, outw_ref, outb_ref,
                          y_ref, ali_ref, h_sc, *, heads, eps):
    """One (batch, query-tile, block) grid step of the decoder stack.

    x_ref:   [1, tq, latent] (bf16)     mem_ref: [1, Tk, embd] (bf16)
    per-block weights arrive with a leading dim of 1 (sliced from the nblk stack).
    y_ref:   [1, tq, od_pad]   (written only at the last block step)
    ali_ref: [1, 1, H, tq, Tk] (written every block step)
    h_sc:    [tq, D] f32 scratch carrying the hidden state across blocks.
    """
    i = pl.program_id(2)
    nblk = pl.num_programs(2)
    D = qw_ref.shape[-1]
    dh = D // heads

    def bdot(a, b):
        # MXU matmul: bf16 inputs, f32 accumulation.
        return jnp.dot(a.astype(jnp.bfloat16), b.astype(jnp.bfloat16),
                       preferred_element_type=jnp.float32)

    def bdot_t(a, b):
        # a [M, d] x b [N, d] -> [M, N]; contract last dims (no explicit transpose).
        return jax.lax.dot_general(
            a.astype(jnp.bfloat16), b.astype(jnp.bfloat16),
            dimension_numbers=(((1,), (1,)), ((), ())),
            preferred_element_type=jnp.float32)

    def layer_norm(v, g, b):
        mu = jnp.mean(v, axis=-1, keepdims=True)
        var = jnp.mean(jnp.square(v - mu), axis=-1, keepdims=True)
        return (v - mu) * jax.lax.rsqrt(var + eps) * g + b

    # pre_projection only on the first block step; h lives in VMEM scratch after.
    @pl.when(i == 0)
    def _():
        h_sc[...] = bdot(x_ref[0], pre_w_ref[...]) + pre_b_ref[...]

    h = h_sc[...]                                    # [tq, D] f32
    mem = mem_ref[0]                                 # [Tk, E] bf16

    # Q projection (attention scale folded into qw/qb) + fused K/V projection.
    q = bdot(h, qw_ref[0]) + qb_ref[0]               # [tq, D]
    kv = bdot(mem, kvw_ref[0]) + kvb_ref[0]          # [Tk, 2D]

    # Per-head cross attention; contexts are concatenated so the output
    # projection is ONE K=D matmul instead of H tiny K=dh matmuls.
    # TODO(synk): z_lengths / text_lengths masking not exercised (lengths=None
    # path of the PyTorch forward).  For production dims keep dh >= 128 (or use
    # a batched dot_general) so the per-head contraction fills the MXU.
    ctx_heads = []
    for hh in range(heads):
        lo = hh * dh
        q_h = q[:, lo:lo + dh]
        k_h = kv[:, lo:lo + dh]
        v_h = kv[:, D + lo:D + lo + dh]
        s = bdot_t(q_h, k_h)                         # [tq, Tk] (already scaled)
        s = s - jnp.max(s, axis=-1, keepdims=True)
        e = jnp.exp(s)
        p = e / jnp.sum(e, axis=-1, keepdims=True)   # exact: exported as alignment
        ali_ref[0, 0, hh] = p.astype(ali_ref.dtype)
        ctx_heads.append(bdot(p, v_h))               # [tq, dh]
    ctx = jnp.concatenate(ctx_heads, axis=-1)        # [tq, D]
    att = bdot(ctx, ow_ref[0]) + ob_ref[0]

    h = layer_norm(h + att, ln1g_ref[0], ln1b_ref[0])
    f = jnp.maximum(bdot(h, f1w_ref[0]) + f1b_ref[0], 0.0)
    f = bdot(f, f2w_ref[0]) + f2b_ref[0]
    h = layer_norm(h + f, ln2g_ref[0], ln2b_ref[0])
    h_sc[...] = h

    # out_projection only on the last block step (lane-dense padded width).
    @pl.when(i == nblk - 1)
    def _():
        y_ref[0] = (bdot(h, outw_ref[...]) + outb_ref[...]).astype(y_ref.dtype)


def _postnet_kernel(*refs, n_conv, ksize):
    """PostNet (conv -> BN(eval, folded) -> tanh) chain + residual_projection +
    residual add, for one batch element.
    refs = [y0_pad, (conv_w, conv_b) * n_conv, res_w, res_b, out]."""
    y0_ref = refs[0]
    conv_refs = refs[1:1 + 2 * n_conv]
    rw_ref = refs[1 + 2 * n_conv]
    rb_ref = refs[2 + 2 * n_conv]
    out_ref = refs[-1]

    def bdot(a, b):
        return jnp.dot(a.astype(jnp.bfloat16), b.astype(jnp.bfloat16),
                       preferred_element_type=jnp.float32)

    y0 = y0_ref[0]                                   # [T2, od_pad] f32
    t2 = y0.shape[0]
    pad_l = (ksize - 1) // 2

    def shifted(a, d):
        # row t of result = a[t + d], zero outside [0, t2): a 'same'-padded conv
        # tap expressed as a sublane roll (XLU) + mask, no concatenate/copies.
        if d == 0:
            return a
        rolled = pltpu.roll(a, shift=(-d) % t2, axis=0)
        idx = jax.lax.broadcasted_iota(jnp.int32, a.shape, 0)
        valid = jnp.logical_and(idx + d >= 0, idx + d < t2)
        return jnp.where(valid, rolled, jnp.zeros_like(rolled))

    h = y0
    for c in range(n_conv):
        w_ref = conv_refs[2 * c]                     # [K, Cin, Cout] bf16 (BN folded)
        b_ref = conv_refs[2 * c + 1]                 # [1, Cout] f32 (bias + BN shift)
        acc = jnp.zeros((t2, w_ref.shape[-1]), jnp.float32)
        for kk in range(ksize):
            acc = acc + bdot(shifted(h, kk - pad_l), w_ref[kk])
        h = jnp.tanh(acc + b_ref[...])
        # TODO(synk): post_drop_rate dropout omitted (eval mode => identity).

    res = bdot(h, rw_ref[...]) + rb_ref[...]         # [T2, od_pad]
    out_ref[0] = (res + y0).astype(out_ref.dtype)


# ----------------------------- BlockSpec helpers ---------------------------- #

def _rep3(shape):
    """Weight resident across the whole (b, t, i) decoder grid."""
    nd = len(shape)
    return pl.BlockSpec(tuple(shape), lambda b, t, i, _n=nd: (0,) * _n)


def _blk3(shape):
    """Stacked per-block weight [nblk, ...] indexed by the block grid axis i."""
    nd = len(shape)
    return pl.BlockSpec((1,) + tuple(shape[1:]),
                        lambda b, t, i, _n=nd: (i,) + (0,) * (_n - 1))


def _rep1(shape):
    nd = len(shape)
    return pl.BlockSpec(tuple(shape), lambda b, _n=nd: (0,) * _n)


# ----------------------------- kernel wrappers ------------------------------ #

def decoder_stack(inputs, text_embd, kp, cfg):
    B, T, latent = inputs.shape
    _, Tk, E = text_embd.shape
    H = cfg["attention_heads"]
    nblk = cfg["nblk"]
    D = cfg["attention_dim"]
    od_pad = kp["out_w"].shape[-1]

    tq = T if T <= 256 else 256
    assert T % tq == 0
    Tt = T // tq

    x = inputs.astype(jnp.bfloat16)
    mem = text_embd.astype(jnp.bfloat16)

    args = [x, mem, kp["pre_w"], kp["pre_b"],
            kp["qw"], kp["qb"], kp["kvw"], kp["kvb"],
            kp["ow"], kp["ob"], kp["ln1_g"], kp["ln1_b"],
            kp["f1w"], kp["f1b"], kp["f2w"], kp["f2b"],
            kp["ln2_g"], kp["ln2_b"], kp["out_w"], kp["out_b"]]

    in_specs = [
        pl.BlockSpec((1, tq, latent), lambda b, t, i: (b, t, 0)),
        pl.BlockSpec((1, Tk, E), lambda b, t, i: (b, 0, 0)),
        _rep3(kp["pre_w"].shape), _rep3(kp["pre_b"].shape),
    ]
    in_specs += [_blk3(a.shape) for a in args[4:18]]
    in_specs += [_rep3(kp["out_w"].shape), _rep3(kp["out_b"].shape)]

    out_shape = (jax.ShapeDtypeStruct((B, T, od_pad), jnp.float32),
                 jax.ShapeDtypeStruct((B, nblk, H, T, Tk), jnp.float32))
    out_specs = (pl.BlockSpec((1, tq, od_pad), lambda b, t, i: (b, t, 0)),
                 pl.BlockSpec((1, 1, H, tq, Tk), lambda b, t, i: (b, i, 0, t, 0)))

    y, ali = pl.pallas_call(
        functools.partial(_decoder_stack_kernel, heads=H, eps=1e-5),
        grid=(B, Tt, nblk),
        in_specs=in_specs,
        out_specs=out_specs,
        out_shape=out_shape,
        scratch_shapes=[pltpu.VMEM((tq, D), jnp.float32)],
        compiler_params=pltpu.CompilerParams(
            dimension_semantics=("parallel", "parallel", "arbitrary"),
            vmem_limit_bytes=48 * 1024 * 1024),
    )(*args)
    return y, ali


def postnet_residual(y0, kp, cfg):
    B, T2, od = y0.shape
    od_pad = kp["res_w"].shape[-1]
    n_conv = cfg["post_n_conv"]
    K = cfg["post_conv_kernel"]

    # Lane-dense channel padding (zeros); first conv layer's in_ch is padded to match.
    y0p = jnp.pad(y0, ((0, 0), (0, 0), (0, od_pad - od)))

    args = [y0p]
    for cw, cb in kp["postnet"]:
        args += [cw, cb]
    args += [kp["res_w"], kp["res_b"]]

    in_specs = [pl.BlockSpec((1, T2, od_pad), lambda b: (b, 0, 0))]
    in_specs += [_rep1(a.shape) for a in args[1:]]

    out = pl.pallas_call(
        functools.partial(_postnet_kernel, n_conv=n_conv, ksize=K),
        grid=(B,),
        in_specs=in_specs,
        out_specs=pl.BlockSpec((1, T2, od_pad), lambda b: (b, 0, 0)),
        out_shape=jax.ShapeDtypeStruct((B, T2, od_pad), jnp.float32),
        compiler_params=pltpu.CompilerParams(
            dimension_semantics=("parallel",),
            vmem_limit_bytes=32 * 1024 * 1024),
    )(*args)
    return out[:, :, :od]


# ----------------------------- parameters ------------------------------ #

def init_params(key, cfg):
    """Natural-layout f32 parameters (mirrors the PyTorch module)."""
    D = cfg["attention_dim"]
    E = cfg["embd_dim"]
    Fh = cfg["ffn_hidden"]
    nblk = cfg["nblk"]
    od = cfg["out_dim"]
    mrf = cfg["max_reduction_factor"]
    K = cfg["post_conv_kernel"]
    CF = cfg["post_conv_filters"]

    keys = iter(jax.random.split(key, 64))

    def w(shape, s=0.05):
        return jax.random.normal(next(keys), shape, jnp.float32) * s

    zeros = lambda s: jnp.zeros(s, jnp.float32)
    ones = lambda s: jnp.ones(s, jnp.float32)

    params = {
        "pre_w": w((cfg["latent_dim"], D)), "pre_b": zeros((1, D)),
        "out_w": w((D, od * mrf)), "out_b": zeros((1, od * mrf)),
        "res_w": w((CF, od)), "res_b": zeros((1, od)),
        "blocks": {
            "qw": w((nblk, D, D)), "qb": zeros((nblk, 1, D)),
            "kw": w((nblk, E, D)), "kb": zeros((nblk, 1, D)),
            "vw": w((nblk, E, D)), "vb": zeros((nblk, 1, D)),
            "ow": w((nblk, D, D)), "ob": zeros((nblk, 1, D)),
            "ln1_g": ones((nblk, 1, D)), "ln1_b": zeros((nblk, 1, D)),
            "f1w": w((nblk, D, Fh)), "f1b": zeros((nblk, 1, Fh)),
            "f2w": w((nblk, Fh, D)), "f2b": zeros((nblk, 1, D)),
            "ln2_g": ones((nblk, 1, D)), "ln2_b": zeros((nblk, 1, D)),
        },
        "postnet": [],
    }
    in_ch = od
    for _ in range(cfg["post_n_conv"]):
        params["postnet"].append({
            "w": w((K, in_ch, CF)), "b": zeros((CF,)),
            "gamma": ones((CF,)), "beta": zeros((CF,)),
            "mean": zeros((CF,)), "var": ones((CF,)),
        })
        in_ch = CF
    return params


def prepare_kernel_params(params, cfg, eps=1e-5):
    """One-time fold/cast pass: bf16 matmul weights, fused K/V, attention scale
    folded into Q, eval-BatchNorm folded into conv weights, lane-dense (x128)
    padded output projections."""
    D = cfg["attention_dim"]
    H = cfg["attention_heads"]
    dh = D // H
    scale = 1.0 / (math.sqrt(dh) * cfg["temperature"])
    od = cfg["out_dim"]
    od_full = od * cfg["max_reduction_factor"]
    od_pad_dec = _round_up(od_full, 128)
    od_pad_post = _round_up(od, 128)

    blk = params["blocks"]
    bf = lambda a: a.astype(jnp.bfloat16)

    kp = {
        "pre_w": bf(params["pre_w"]), "pre_b": params["pre_b"],
        "qw": bf(blk["qw"] * scale), "qb": blk["qb"] * scale,
        "kvw": bf(jnp.concatenate([blk["kw"], blk["vw"]], axis=-1)),
        "kvb": jnp.concatenate([blk["kb"], blk["vb"]], axis=-1),
        "ow": bf(blk["ow"]), "ob": blk["ob"],
        "ln1_g": blk["ln1_g"], "ln1_b": blk["ln1_b"],
        "f1w": bf(blk["f1w"]), "f1b": blk["f1b"],
        "f2w": bf(blk["f2w"]), "f2b": blk["f2b"],
        "ln2_g": blk["ln2_g"], "ln2_b": blk["ln2_b"],
        "out_w": bf(jnp.pad(params["out_w"], ((0, 0), (0, od_pad_dec - od_full)))),
        "out_b": jnp.pad(params["out_b"], ((0, 0), (0, od_pad_dec - od_full))),
        "res_w": bf(jnp.pad(params["res_w"], ((0, 0), (0, od_pad_post - od)))),
        "res_b": jnp.pad(params["res_b"], ((0, 0), (0, od_pad_post - od))),
    }

    convs = []
    for li, cp in enumerate(params["postnet"]):
        bn_scale = cp["gamma"] / jnp.sqrt(cp["var"] + eps)
        w_folded = cp["w"] * bn_scale[None, None, :]
        b_folded = (cp["b"] * bn_scale + cp["beta"]
                    - cp["mean"] * bn_scale).reshape(1, -1)
        if li == 0:  # match the lane-padded postnet input channels
            w_folded = jnp.pad(w_folded, ((0, 0), (0, od_pad_post - od), (0, 0)))
        convs.append((bf(w_folded), b_folded))
    kp["postnet"] = convs
    return kp


# ----------------------------- forward pass ------------------------------ #

def transformer_decoder_forward(kparams, inputs, text_embd, cfg,
                                reduction_factor=2):
    # inputs:    [B, max_audio_time, latent_dim]
    # text_embd: [B, max_text_time, embd_dim]
    B, T, _ = inputs.shape
    od = cfg["out_dim"]

    proj_out, ali_all = decoder_stack(inputs, text_embd, kparams, cfg)

    initial_outs = proj_out[:, :, :reduction_factor * od]
    initial_outs = initial_outs.reshape(B, T * reduction_factor, od)

    outputs = postnet_residual(initial_outs, kparams, cfg)

    alignments = {
        "decoder-attention-{}".format(i): ali_all[:, i]
        for i in range(cfg["nblk"])
    }
    return initial_outs, outputs, alignments


# ----------------------------- main ------------------------------ #

if __name__ == "__main__":
    cfg = dict(
        nblk=2,
        embd_dim=16,
        attention_dim=16,
        attention_heads=2,
        temperature=1.0,
        ffn_hidden=32,
        post_n_conv=2,
        post_conv_filters=16,
        post_conv_kernel=3,
        post_drop_rate=0.1,
        latent_dim=8,
        out_dim=8,
        max_reduction_factor=2,
    )
    key = jax.random.PRNGKey(0)
    pkey, xkey, tkey = jax.random.split(key, 3)

    params = init_params(pkey, cfg)
    kparams = prepare_kernel_params(params, cfg)

    batch, max_audio_time, max_text_time = 2, 8, 8
    inputs = jax.random.normal(xkey, (batch, max_audio_time, cfg["latent_dim"]),
                               jnp.float32)
    text_embd = jax.random.normal(tkey, (batch, max_text_time, cfg["embd_dim"]),
                                  jnp.float32)

    initial_outs, outputs, alignments = transformer_decoder_forward(
        kparams, inputs, text_embd, cfg, reduction_factor=2)

    jax.block_until_ready(outputs)
    assert initial_outs.shape == (batch, max_audio_time * 2, cfg["out_dim"])
    assert outputs.shape == (batch, max_audio_time * 2, cfg["out_dim"])
    assert alignments["decoder-attention-0"].shape == (
        batch, cfg["attention_heads"], max_audio_time, max_text_time)
    print("KERNEL_OK")
</pallas_src>

<mosaic_0001>
module attributes {stable_mosaic.version = 11 : i64} {
  func.func @_decoder_stack_kernel(%arg0: i32, %arg1: i32, %arg2: i32, %arg3: memref<1x8x8xbf16, #tpu.memory_space<vmem>>, %arg4: memref<1x8x16xbf16, #tpu.memory_space<vmem>>, %arg5: memref<8x16xbf16, #tpu.memory_space<vmem>>, %arg6: memref<1x16xf32, #tpu.memory_space<vmem>>, %arg7: memref<1x16x16xbf16, #tpu.memory_space<vmem>>, %arg8: memref<1x1x16xf32, #tpu.memory_space<vmem>>, %arg9: memref<1x16x32xbf16, #tpu.memory_space<vmem>>, %arg10: memref<1x1x32xf32, #tpu.memory_space<vmem>>, %arg11: memref<1x16x16xbf16, #tpu.memory_space<vmem>>, %arg12: memref<1x1x16xf32, #tpu.memory_space<vmem>>, %arg13: memref<1x1x16xf32, #tpu.memory_space<vmem>>, %arg14: memref<1x1x16xf32, #tpu.memory_space<vmem>>, %arg15: memref<1x16x32xbf16, #tpu.memory_space<vmem>>, %arg16: memref<1x1x32xf32, #tpu.memory_space<vmem>>, %arg17: memref<1x32x16xbf16, #tpu.memory_space<vmem>>, %arg18: memref<1x1x16xf32, #tpu.memory_space<vmem>>, %arg19: memref<1x1x16xf32, #tpu.memory_space<vmem>>, %arg20: memref<1x1x16xf32, #tpu.memory_space<vmem>>, %arg21: memref<16x128xbf16, #tpu.memory_space<vmem>>, %arg22: memref<1x128xf32, #tpu.memory_space<vmem>>, %arg23: memref<1x8x128xf32, #tpu.memory_space<vmem>>, %arg24: memref<1x1x2x8x8xf32, #tpu.memory_space<vmem>>, %arg25: memref<8x16xf32, #tpu.memory_space<vmem>>) attributes {dimension_semantics = [#tpu.dimension_semantics<parallel>, #tpu.dimension_semantics<parallel>, #tpu.dimension_semantics<arbitrary>], iteration_bounds = array<i64: 2, 1, 2>, scalar_prefetch = 0 : i64, scratch_operands = 1 : i64, tpu.core_type = #tpu.core_type<tc>, window_params = [{transform_indices = @transform_0, window_bounds = array<i64: 1, 8, 8>}, {transform_indices = @transform_1, window_bounds = array<i64: 1, 8, 16>}, {pipeline_mode = #tpu.pipeline_mode<synchronous>, transform_indices = @transform_2, window_bounds = array<i64: 8, 16>}, {pipeline_mode = #tpu.pipeline_mode<synchronous>, transform_indices = @transform_3, window_bounds = array<i64: 1, 16>}, {transform_indices = @transform_4, window_bounds = array<i64: 1, 16, 16>}, {transform_indices = @transform_5, window_bounds = array<i64: 1, 1, 16>}, {transform_indices = @transform_6, window_bounds = array<i64: 1, 16, 32>}, {transform_indices = @transform_7, window_bounds = array<i64: 1, 1, 32>}, {transform_indices = @transform_8, window_bounds = array<i64: 1, 16, 16>}, {transform_indices = @transform_9, window_bounds = array<i64: 1, 1, 16>}, {transform_indices = @transform_10, window_bounds = array<i64: 1, 1, 16>}, {transform_indices = @transform_11, window_bounds = array<i64: 1, 1, 16>}, {transform_indices = @transform_12, window_bounds = array<i64: 1, 16, 32>}, {transform_indices = @transform_13, window_bounds = array<i64: 1, 1, 32>}, {transform_indices = @transform_14, window_bounds = array<i64: 1, 32, 16>}, {transform_indices = @transform_15, window_bounds = array<i64: 1, 1, 16>}, {transform_indices = @transform_16, window_bounds = array<i64: 1, 1, 16>}, {transform_indices = @transform_17, window_bounds = array<i64: 1, 1, 16>}, {pipeline_mode = #tpu.pipeline_mode<synchronous>, transform_indices = @transform_18, window_bounds = array<i64: 16, 128>}, {pipeline_mode = #tpu.pipeline_mode<synchronous>, transform_indices = @transform_19, window_bounds = array<i64: 1, 128>}, {transform_indices = @transform_20, window_bounds = array<i64: 1, 8, 128>}, {transform_indices = @transform_21, window_bounds = array<i64: 1, 1, 2, 8, 8>}]} {
    %c0_i32 = arith.constant 0 : i32
    %0 = arith.cmpi eq, %arg2, %c0_i32 : i32
    %1 = arith.extui %0 : i1 to i32
    %c0_i32_0 = arith.constant 0 : i32
    %2 = arith.cmpi ne, %1, %c0_i32_0 : i32
    scf.if %2 {
      %c0_82 = arith.constant 0 : index
      %c0_83 = arith.constant 0 : index
      %c0_84 = arith.constant 0 : index
      %148 = vector.load %arg3[%c0_82, %c0_83, %c0_84] : memref<1x8x8xbf16, #tpu.memory_space<vmem>>, vector<1x8x8xbf16>
      %149 = vector.shape_cast %148 : vector<1x8x8xbf16> to vector<8x8xbf16>
      %c0_85 = arith.constant 0 : index
      %c0_86 = arith.constant 0 : index
      %150 = vector.load %arg5[%c0_85, %c0_86] : memref<8x16xbf16, #tpu.memory_space<vmem>>, vector<8x16xbf16>
      %cst_87 = arith.constant dense<0.000000e+00> : vector<8x16xf32>
      %151 = tpu.matmul %149, %150, %cst_87 {dimension_numbers = #tpu.dot_dimension_numbers<[1], [0], [0], [1], [0, 0, 1, 1], [], []>} : vector<8x8xbf16>, vector<8x16xbf16>, vector<8x16xf32> -> vector<8x16xf32>
      %c0_88 = arith.constant 0 : index
      %c0_89 = arith.constant 0 : index
      %152 = vector.load %arg6[%c0_88, %c0_89] : memref<1x16xf32, #tpu.memory_space<vmem>>, vector<1x16xf32>
      %153 = vector.broadcast %152 : vector<1x16xf32> to vector<8x16xf32>
      %154 = arith.addf %151, %153 : vector<8x16xf32>
      %c0_90 = arith.constant 0 : index
      %c0_91 = arith.constant 0 : index
      %155 = vector.load %arg25[%c0_90, %c0_91] : memref<8x16xf32, #tpu.memory_space<vmem>>, vector<8x16xf32>
      tpu.vector_store %arg25[%c0_90, %c0_91], %154 {strides = array<i32>} : memref<8x16xf32, #tpu.memory_space<vmem>>, vector<8x16xf32>,
    } else {
    }
    %c0 = arith.constant 0 : index
    %c0_1 = arith.constant 0 : index
    %3 = vector.load %arg25[%c0, %c0_1] : memref<8x16xf32, #tpu.memory_space<vmem>>, vector<8x16xf32>
    %c0_2 = arith.constant 0 : index
    %c0_3 = arith.constant 0 : index
    %c0_4 = arith.constant 0 : index
    %4 = vector.load %arg4[%c0_2, %c0_3, %c0_4] : memref<1x8x16xbf16, #tpu.memory_space<vmem>>, vector<1x8x16xbf16>
    %5 = vector.shape_cast %4 : vector<1x8x16xbf16> to vector<8x16xbf16>
    %c0_5 = arith.constant 0 : index
    %c0_6 = arith.constant 0 : index
    %c0_7 = arith.constant 0 : index
    %6 = vector.load %arg7[%c0_5, %c0_6, %c0_7] : memref<1x16x16xbf16, #tpu.memory_space<vmem>>, vector<1x16x16xbf16>
    %7 = vector.shape_cast %6 : vector<1x16x16xbf16> to vector<16x16xbf16>
    %8 = arith.truncf %3 : vector<8x16xf32> to vector<8x16xbf16>
    %cst = arith.constant dense<0.000000e+00> : vector<8x16xf32>
    %9 = tpu.matmul %8, %7, %cst {dimension_numbers = #tpu.dot_dimension_numbers<[1], [0], [0], [1], [0, 0, 1, 1], [], []>} : vector<8x16xbf16>, vector<16x16xbf16>, vector<8x16xf32> -> vector<8x16xf32>
    %c0_8 = arith.constant 0 : index
    %c0_9 = arith.constant 0 : index
    %c0_10 = arith.constant 0 : index
    %10 = vector.load %arg8[%c0_8, %c0_9, %c0_10] : memref<1x1x16xf32, #tpu.memory_space<vmem>>, vector<1x1x16xf32>
    %11 = vector.shape_cast %10 : vector<1x1x16xf32> to vector<1x16xf32>
    %12 = vector.broadcast %11 : vector<1x16xf32> to vector<8x16xf32>
    %13 = arith.addf %9, %12 : vector<8x16xf32>
    %c0_11 = arith.constant 0 : index
    %c0_12 = arith.constant 0 : index
    %c0_13 = arith.constant 0 : index
    %14 = vector.load %arg9[%c0_11, %c0_12, %c0_13] : memref<1x16x32xbf16, #tpu.memory_space<vmem>>, vector<1x16x32xbf16>
    %15 = vector.shape_cast %14 : vector<1x16x32xbf16> to vector<16x32xbf16>
    %cst_14 = arith.constant dense<0.000000e+00> : vector<8x32xf32>
    %16 = tpu.matmul %5, %15, %cst_14 {dimension_numbers = #tpu.dot_dimension_numbers<[1], [0], [0], [1], [0, 0, 1, 1], [], []>} : vector<8x16xbf16>, vector<16x32xbf16>, vector<8x32xf32> -> vector<8x32xf32>
    %c0_15 = arith.constant 0 : index
    %c0_16 = arith.constant 0 : index
    %c0_17 = arith.constant 0 : index
    %17 = vector.load %arg10[%c0_15, %c0_16, %c0_17] : memref<1x1x32xf32, #tpu.memory_space<vmem>>, vector<1x1x32xf32>
    %18 = vector.shape_cast %17 : vector<1x1x32xf32> to vector<1x32xf32>
    %19 = vector.broadcast %18 : vector<1x32xf32> to vector<8x32xf32>
    %20 = arith.addf %16, %19 : vector<8x32xf32>
    %21 = vector.extract_strided_slice %13 {offsets = [0, 0], sizes = [8, 8], strides = [1, 1]} : vector<8x16xf32> to vector<8x8xf32>
    %22 = vector.extract_strided_slice %20 {offsets = [0, 0], sizes = [8, 8], strides = [1, 1]} : vector<8x32xf32> to vector<8x8xf32>
    %23 = vector.extract_strided_slice %20 {offsets = [0, 16], sizes = [8, 8], strides = [1, 1]} : vector<8x32xf32> to vector<8x8xf32>
    %24 = arith.truncf %21 : vector<8x8xf32> to vector<8x8xbf16>
    %25 = arith.truncf %22 : vector<8x8xf32> to vector<8x8xbf16>
    %cst_18 = arith.constant dense<0.000000e+00> : vector<8x8xf32>
    %26 = tpu.matmul %24, %25, %cst_18 {dimension_numbers = #tpu.dot_dimension_numbers<[1], [1], [0], [0], [0, 0, 1, 0], [], []>} : vector<8x8xbf16>, vector<8x8xbf16>, vector<8x8xf32> -> vector<8x8xf32>
    %cst_19 = arith.constant dense<0xFF800000> : vector<8xf32>
    %27 = vector.multi_reduction <maximumf>, %26, %cst_19 [1] : vector<8x8xf32> to vector<8xf32>
    %28 = vector.shape_cast %27 : vector<8xf32> to vector<8x1xf32>
    %29 = vector.broadcast %28 : vector<8x1xf32> to vector<8x8xf32>
    %30 = arith.subf %26, %29 : vector<8x8xf32>
    %31 = math.exp %30 : vector<8x8xf32>
    %cst_20 = arith.constant dense<0.000000e+00> : vector<8xf32>
    %32 = vector.multi_reduction <add>, %31, %cst_20 [1] : vector<8x8xf32> to vector<8xf32>
    %33 = vector.shape_cast %32 : vector<8xf32> to vector<8x1xf32>
    %34 = vector.broadcast %33 : vector<8x1xf32> to vector<8x8xf32>
    %35 = arith.divf %31, %34 : vector<8x8xf32>
    %c0_21 = arith.constant 0 : index
    %c0_22 = arith.constant 0 : index
    %c0_23 = arith.constant 0 : index
    %c0_24 = arith.constant 0 : index
    %c0_25 = arith.constant 0 : index
    %36 = vector.load %arg24[%c0_21, %c0_22, %c0_23, %c0_24, %c0_25] : memref<1x1x2x8x8xf32, #tpu.memory_space<vmem>>, vector<1x1x1x8x8xf32>
    %37 = vector.shape_cast %36 : vector<1x1x1x8x8xf32> to vector<8x8xf32>
    %38 = vector.shape_cast %35 : vector<8x8xf32> to vector<1x1x1x8x8xf32>
    tpu.vector_store %arg24[%c0_21, %c0_22, %c0_23, %c0_24, %c0_25], %38 {strides = array<i32>} : memref<1x1x2x8x8xf32, #tpu.memory_space<vmem>>, vector<1x1x1x8x8xf32>,
    %39 = arith.truncf %35 : vector<8x8xf32> to vector<8x8xbf16>
    %40 = arith.truncf %23 : vector<8x8xf32> to vector<8x8xbf16>
    %cst_26 = arith.constant dense<0.000000e+00> : vector<8x8xf32>
    %41 = tpu.matmul %39, %40, %cst_26 {dimension_numbers = #tpu.dot_dimension_numbers<[1], [0], [0], [1], [0, 0, 1, 1], [], []>} : vector<8x8xbf16>, vector<8x8xbf16>, vector<8x8xf32> -> vector<8x8xf32>
    %42 = vector.extract_strided_slice %13 {offsets = [0, 8], sizes = [8, 8], strides = [1, 1]} : vector<8x16xf32> to vector<8x8xf32>
    %43 = vector.extract_strided_slice %20 {offsets = [0, 8], sizes = [8, 8], strides = [1, 1]} : vector<8x32xf32> to vector<8x8xf32>
    %44 = vector.extract_strided_slice %20 {offsets = [0, 24], sizes = [8, 8], strides = [1, 1]} : vector<8x32xf32> to vector<8x8xf32>
    %45 = arith.truncf %42 : vector<8x8xf32> to vector<8x8xbf16>
    %46 = arith.truncf %43 : vector<8x8xf32> to vector<8x8xbf16>
    %cst_27 = arith.constant dense<0.000000e+00> : vector<8x8xf32>
    %47 = tpu.matmul %45, %46, %cst_27 {dimension_numbers = #tpu.dot_dimension_numbers<[1], [1], [0], [0], [0, 0, 1, 0], [], []>} : vector<8x8xbf16>, vector<8x8xbf16>, vector<8x8xf32> -> vector<8x8xf32>
    %cst_28 = arith.constant dense<0xFF800000> : vector<8xf32>
    %48 = vector.multi_reduction <maximumf>, %47, %cst_28 [1] : vector<8x8xf32> to vector<8xf32>
    %49 = vector.shape_cast %48 : vector<8xf32> to vector<8x1xf32>
    %50 = vector.broadcast %49 : vector<8x1xf32> to vector<8x8xf32>
    %51 = arith.subf %47, %50 : vector<8x8xf32>
    %52 = math.exp %51 : vector<8x8xf32>
    %cst_29 = arith.constant dense<0.000000e+00> : vector<8xf32>
    %53 = vector.multi_reduction <add>, %52, %cst_29 [1] : vector<8x8xf32> to vector<8xf32>
    %54 = vector.shape_cast %53 : vector<8xf32> to vector<8x1xf32>
    %55 = vector.broadcast %54 : vector<8x1xf32> to vector<8x8xf32>
    %56 = arith.divf %52, %55 : vector<8x8xf32>
    %c0_30 = arith.constant 0 : index
    %c0_31 = arith.constant 0 : index
    %c1 = arith.constant 1 : index
    %c0_32 = arith.constant 0 : index
    %c0_33 = arith.constant 0 : index
    %57 = vector.load %arg24[%c0_30, %c0_31, %c1, %c0_32, %c0_33] : memref<1x1x2x8x8xf32, #tpu.memory_space<vmem>>, vector<1x1x1x8x8xf32>
    %58 = vector.shape_cast %57 : vector<1x1x1x8x8xf32> to vector<8x8xf32>
    %59 = vector.shape_cast %56 : vector<8x8xf32> to vector<1x1x1x8x8xf32>
    tpu.vector_store %arg24[%c0_30, %c0_31, %c1, %c0_32, %c0_33], %59 {strides = array<i32>} : memref<1x1x2x8x8xf32, #tpu.memory_space<vmem>>, vector<1x1x1x8x8xf32>,
    %60 = arith.truncf %56 : vector<8x8xf32> to vector<8x8xbf16>
    %61 = arith.truncf %44 : vector<8x8xf32> to vector<8x8xbf16>
    %cst_34 = arith.constant dense<0.000000e+00> : vector<8x8xf32>
    %62 = tpu.matmul %60, %61, %cst_34 {dimension_numbers = #tpu.dot_dimension_numbers<[1], [0], [0], [1], [0, 0, 1, 1], [], []>} : vector<8x8xbf16>, vector<8x8xbf16>, vector<8x8xf32> -> vector<8x8xf32>
    %63 = tpu.concatenate %41, %62 in 1 : vector<8x8xf32>, vector<8x8xf32> -> vector<8x16xf32>
    %c0_35 = arith.constant 0 : index
    %c0_36 = arith.constant 0 : index
    %c0_37 = arith.constant 0 : index
    %64 = vector.load %arg11[%c0_35, %c0_36, %c0_37] : memref<1x16x16xbf16, #tpu.memory_space<vmem>>, vector<1x16x16xbf16>
    %65 = vector.shape_cast %64 : vector<1x16x16xbf16> to vector<16x16xbf16>
    %66 = arith.truncf %63 : vector<8x16xf32> to vector<8x16xbf16>
    %cst_38 = arith.constant dense<0.000000e+00> : vector<8x16xf32>
    %67 = tpu.matmul %66, %65, %cst_38 {dimension_numbers = #tpu.dot_dimension_numbers<[1], [0], [0], [1], [0, 0, 1, 1], [], []>} : vector<8x16xbf16>, vector<16x16xbf16>, vector<8x16xf32> -> vector<8x16xf32>
    %c0_39 = arith.constant 0 : index
    %c0_40 = arith.constant 0 : index
    %c0_41 = arith.constant 0 : index
    %68 = vector.load %arg12[%c0_39, %c0_40, %c0_41] : memref<1x1x16xf32, #tpu.memory_space<vmem>>, vector<1x1x16xf32>
    %69 = vector.shape_cast %68 : vector<1x1x16xf32> to vector<1x16xf32>
    %70 = vector.broadcast %69 : vector<1x16xf32> to vector<8x16xf32>
    %71 = arith.addf %67, %70 : vector<8x16xf32>
    %72 = arith.addf %3, %71 : vector<8x16xf32>
    %c0_42 = arith.constant 0 : index
    %c0_43 = arith.constant 0 : index
    %c0_44 = arith.constant 0 : index
    %73 = vector.load %arg13[%c0_42, %c0_43, %c0_44] : memref<1x1x16xf32, #tpu.memory_space<vmem>>, vector<1x1x16xf32>
    %74 = vector.shape_cast %73 : vector<1x1x16xf32> to vector<1x16xf32>
    %c0_45 = arith.constant 0 : index
    %c0_46 = arith.constant 0 : index
    %c0_47 = arith.constant 0 : index
    %75 = vector.load %arg14[%c0_45, %c0_46, %c0_47] : memref<1x1x16xf32, #tpu.memory_space<vmem>>, vector<1x1x16xf32>
    %76 = vector.shape_cast %75 : vector<1x1x16xf32> to vector<1x16xf32>
    %cst_48 = arith.constant dense<0.000000e+00> : vector<8xf32>
    %77 = vector.multi_reduction <add>, %72, %cst_48 [1] : vector<8x16xf32> to vector<8xf32>
    %78 = vector.shape_cast %77 : vector<8xf32> to vector<8x1xf32>
    %cst_49 = arith.constant 1.600000e+01 : f32
    %79 = vector.broadcast %cst_49 : f32 to vector<8x1xf32>
    %80 = arith.divf %78, %79 : vector<8x1xf32>
    %81 = vector.broadcast %80 : vector<8x1xf32> to vector<8x16xf32>
    %82 = arith.subf %72, %81 : vector<8x16xf32>
    %83 = arith.mulf %82, %82 : vector<8x16xf32>
    %cst_50 = arith.constant dense<0.000000e+00> : vector<8xf32>
    %84 = vector.multi_reduction <add>, %83, %cst_50 [1] : vector<8x16xf32> to vector<8xf32>
    %85 = vector.shape_cast %84 : vector<8xf32> to vector<8x1xf32>
    %cst_51 = arith.constant 1.600000e+01 : f32
    %86 = vector.broadcast %cst_51 : f32 to vector<8x1xf32>
    %87 = arith.divf %85, %86 : vector<8x1xf32>
    %88 = vector.broadcast %80 : vector<8x1xf32> to vector<8x16xf32>
    %89 = arith.subf %72, %88 : vector<8x16xf32>
    %cst_52 = arith.constant 9.99999974E-6 : f32
    %90 = vector.broadcast %cst_52 : f32 to vector<8x1xf32>
    %91 = arith.addf %87, %90 : vector<8x1xf32>
    %92 = math.rsqrt %91 : vector<8x1xf32>
    %93 = vector.broadcast %92 : vector<8x1xf32> to vector<8x16xf32>
    %94 = arith.mulf %89, %93 : vector<8x16xf32>
    %95 = vector.broadcast %74 : vector<1x16xf32> to vector<8x16xf32>
    %96 = arith.mulf %94, %95 : vector<8x16xf32>
    %97 = vector.broadcast %76 : vector<1x16xf32> to vector<8x16xf32>
    %98 = arith.addf %96, %97 : vector<8x16xf32>
    %c0_53 = arith.constant 0 : index
    %c0_54 = arith.constant 0 : index
    %c0_55 = arith.constant 0 : index
    %99 = vector.load %arg15[%c0_53, %c0_54, %c0_55] : memref<1x16x32xbf16, #tpu.memory_space<vmem>>, vector<1x16x32xbf16>
    %100 = vector.shape_cast %99 : vector<1x16x32xbf16> to vector<16x32xbf16>
    %101 = arith.truncf %98 : vector<8x16xf32> to vector<8x16xbf16>
    %cst_56 = arith.constant dense<0.000000e+00> : vector<8x32xf32>
    %102 = tpu.matmul %101, %100, %cst_56 {dimension_numbers = #tpu.dot_dimension_numbers<[1], [0], [0], [1], [0, 0, 1, 1], [], []>} : vector<8x16xbf16>, vector<16x32xbf16>, vector<8x32xf32> -> vector<8x32xf32>
    %c0_57 = arith.constant 0 : index
    %c0_58 = arith.constant 0 : index
    %c0_59 = arith.constant 0 : index
    %103 = vector.load %arg16[%c0_57, %c0_58, %c0_59] : memref<1x1x32xf32, #tpu.memory_space<vmem>>, vector<1x1x32xf32>
    %104 = vector.shape_cast %103 : vector<1x1x32xf32> to vector<1x32xf32>
    %105 = vector.broadcast %104 : vector<1x32xf32> to vector<8x32xf32>
    %106 = arith.addf %102, %105 : vector<8x32xf32>
    %cst_60 = arith.constant 0.000000e+00 : f32
    %107 = vector.broadcast %cst_60 : f32 to vector<8x32xf32>
    %108 = arith.maximumf %106, %107 : vector<8x32xf32>
    %c0_61 = arith.constant 0 : index
    %c0_62 = arith.constant 0 : index
    %c0_63 = arith.constant 0 : index
    %109 = vector.load %arg17[%c0_61, %c0_62, %c0_63] : memref<1x32x16xbf16, #tpu.memory_space<vmem>>, vector<1x32x16xbf16>
    %110 = vector.shape_cast %109 : vector<1x32x16xbf16> to vector<32x16xbf16>
    %111 = arith.truncf %108 : vector<8x32xf32> to vector<8x32xbf16>
    %cst_64 = arith.constant dense<0.000000e+00> : vector<8x16xf32>
    %112 = tpu.matmul %111, %110, %cst_64 {dimension_numbers = #tpu.dot_dimension_numbers<[1], [0], [0], [1], [0, 0, 1, 1], [], []>} : vector<8x32xbf16>, vector<32x16xbf16>, vector<8x16xf32> -> vector<8x16xf32>
    %c0_65 = arith.constant 0 : index
    %c0_66 = arith.constant 0 : index
    %c0_67 = arith.constant 0 : index
    %113 = vector.load %arg18[%c0_65, %c0_66, %c0_67] : memref<1x1x16xf32, #tpu.memory_space<vmem>>, vector<1x1x16xf32>
    %114 = vector.shape_cast %113 : vector<1x1x16xf32> to vector<1x16xf32>
    %115 = vector.broadcast %114 : vector<1x16xf32> to vector<8x16xf32>
    %116 = arith.addf %112, %115 : vector<8x16xf32>
    %117 = arith.addf %98, %116 : vector<8x16xf32>
    %c0_68 = arith.constant 0 : index
    %c0_69 = arith.constant 0 : index
    %c0_70 = arith.constant 0 : index
    %118 = vector.load %arg19[%c0_68, %c0_69, %c0_70] : memref<1x1x16xf32, #tpu.memory_space<vmem>>, vector<1x1x16xf32>
    %119 = vector.shape_cast %118 : vector<1x1x16xf32> to vector<1x16xf32>
    %c0_71 = arith.constant 0 : index
    %c0_72 = arith.constant 0 : index
    %c0_73 = arith.constant 0 : index
    %120 = vector.load %arg20[%c0_71, %c0_72, %c0_73] : memref<1x1x16xf32, #tpu.memory_space<vmem>>, vector<1x1x16xf32>
    %121 = vector.shape_cast %120 : vector<1x1x16xf32> to vector<1x16xf32>
    %cst_74 = arith.constant dense<0.000000e+00> : vector<8xf32>
    %122 = vector.multi_reduction <add>, %117, %cst_74 [1] : vector<8x16xf32> to vector<8xf32>
    %123 = vector.shape_cast %122 : vector<8xf32> to vector<8x1xf32>
    %cst_75 = arith.constant 1.600000e+01 : f32
    %124 = vector.broadcast %cst_75 : f32 to vector<8x1xf32>
    %125 = arith.divf %123, %124 : vector<8x1xf32>
    %126 = vector.broadcast %125 : vector<8x1xf32> to vector<8x16xf32>
    %127 = arith.subf %117, %126 : vector<8x16xf32>
    %128 = arith.mulf %127, %127 : vector<8x16xf32>
    %cst_76 = arith.constant dense<0.000000e+00> : vector<8xf32>
    %129 = vector.multi_reduction <add>, %128, %cst_76 [1] : vector<8x16xf32> to vector<8xf32>
    %130 = vector.shape_cast %129 : vector<8xf32> to vector<8x1xf32>
    %cst_77 = arith.constant 1.600000e+01 : f32
    %131 = vector.broadcast %cst_77 : f32 to vector<8x1xf32>
    %132 = arith.divf %130, %131 : vector<8x1xf32>
    %133 = vector.broadcast %125 : vector<8x1xf32> to vector<8x16xf32>
    %134 = arith.subf %117, %133 : vector<8x16xf32>
    %cst_78 = arith.constant 9.99999974E-6 : f32
    %135 = vector.broadcast %cst_78 : f32 to vector<8x1xf32>
    %136 = arith.addf %132, %135 : vector<8x1xf32>
    %137 = math.rsqrt %136 : vector<8x1xf32>
    %138 = vector.broadcast %137 : vector<8x1xf32> to vector<8x16xf32>
    %139 = arith.mulf %134, %138 : vector<8x16xf32>
    %140 = vector.broadcast %119 : vector<1x16xf32> to vector<8x16xf32>
    %141 = arith.mulf %139, %140 : vector<8x16xf32>
    %142 = vector.broadcast %121 : vector<1x16xf32> to vector<8x16xf32>
    %143 = arith.addf %141, %142 : vector<8x16xf32>
    %c0_79 = arith.constant 0 : index
    %c0_80 = arith.constant 0 : index
    %144 = vector.load %arg25[%c0_79, %c0_80] : memref<8x16xf32, #tpu.memory_space<vmem>>, vector<8x16xf32>
    tpu.vector_store %arg25[%c0_79, %c0_80], %143 {strides = array<i32>} : memref<8x16xf32, #tpu.memory_space<vmem>>, vector<8x16xf32>,
    %c1_i32 = arith.constant 1 : i32
    %145 = arith.cmpi eq, %arg2, %c1_i32 : i32
    %146 = arith.extui %145 : i1 to i32
    %c0_i32_81 = arith.constant 0 : i32
    %147 = arith.cmpi ne, %146, %c0_i32_81 : i32
    scf.if %147 {
      %c0_82 = arith.constant 0 : index
      %c0_83 = arith.constant 0 : index
      %148 = vector.load %arg21[%c0_82, %c0_83] : memref<16x128xbf16, #tpu.memory_space<vmem>>, vector<16x128xbf16>
      %149 = arith.truncf %143 : vector<8x16xf32> to vector<8x16xbf16>
      %cst_84 = arith.constant dense<0.000000e+00> : vector<8x128xf32>
      %150 = tpu.matmul %149, %148, %cst_84 {dimension_numbers = #tpu.dot_dimension_numbers<[1], [0], [0], [1], [0, 0, 1, 1], [], []>} : vector<8x16xbf16>, vector<16x128xbf16>, vector<8x128xf32> -> vector<8x128xf32>
      %c0_85 = arith.constant 0 : index
      %c0_86 = arith.constant 0 : index
      %151 = vector.load %arg22[%c0_85, %c0_86] : memref<1x128xf32, #tpu.memory_space<vmem>>, vector<1x128xf32>
      %152 = vector.broadcast %151 : vector<1x128xf32> to vector<8x128xf32>
      %153 = arith.addf %150, %152 : vector<8x128xf32>
      %c0_87 = arith.constant 0 : index
      %c0_88 = arith.constant 0 : index
      %c0_89 = arith.constant 0 : index
      %154 = vector.load %arg23[%c0_87, %c0_88, %c0_89] : memref<1x8x128xf32, #tpu.memory_space<vmem>>, vector<1x8x128xf32>
      %155 = vector.shape_cast %154 : vector<1x8x128xf32> to vector<8x128xf32>
      %156 = vector.shape_cast %153 : vector<8x128xf32> to vector<1x8x128xf32>
      tpu.vector_store %arg23[%c0_87, %c0_88, %c0_89], %156 {strides = array<i32>} : memref<1x8x128xf32, #tpu.memory_space<vmem>>, vector<1x8x128xf32>,
    } else {
    }
    return
  }
  func.func @transform_0(%arg0: i32, %arg1: i32, %arg2: i32) -> (i32, i32, i32) {
    %c0_i32 = arith.constant 0 : i32
    %c0_i32_0 = arith.constant 0 : i32
    return %arg0, %arg1, %c0_i32 : i32, i32, i32
  }
  func.func @transform_1(%arg0: i32, %arg1: i32, %arg2: i32) -> (i32, i32, i32) {
    %c0_i32 = arith.constant 0 : i32
    %c0_i32_0 = arith.constant 0 : i32
    %c0_i32_1 = arith.constant 0 : i32
    return %arg0, %c0_i32, %c0_i32_0 : i32, i32, i32
  }
  func.func @transform_2(%arg0: i32, %arg1: i32, %arg2: i32) -> (i32, i32) {
    %c0_i32 = arith.constant 0 : i32
    %c0_i32_0 = arith.constant 0 : i32
    %c0_i32_1 = arith.constant 0 : i32
    return %c0_i32, %c0_i32_0 : i32, i32
  }
  func.func @transform_3(%arg0: i32, %arg1: i32, %arg2: i32) -> (i32, i32) {
    %c0_i32 = arith.constant 0 : i32
    %c0_i32_0 = arith.constant 0 : i32
    %c0_i32_1 = arith.constant 0 : i32
    return %c0_i32, %c0_i32_0 : i32, i32
  }
  func.func @transform_4(%arg0: i32, %arg1: i32, %arg2: i32) -> (i32, i32, i32) {
    %c0_i32 = arith.constant 0 : i32
    %c0_i32_0 = arith.constant 0 : i32
    %c0_i32_1 = arith.constant 0 : i32
    return %arg2, %c0_i32, %c0_i32_0 : i32, i32, i32
  }
  func.func @transform_5(%arg0: i32, %arg1: i32, %arg2: i32) -> (i32, i32, i32) {
    %c0_i32 = arith.constant 0 : i32
    %c0_i32_0 = arith.constant 0 : i32
    %c0_i32_1 = arith.constant 0 : i32
    return %arg2, %c0_i32, %c0_i32_0 : i32, i32, i32
  }
  func.func @transform_6(%arg0: i32, %arg1: i32, %arg2: i32) -> (i32, i32, i32) {
    %c0_i32 = arith.constant 0 : i32
    %c0_i32_0 = arith.constant 0 : i32
    %c0_i32_1 = arith.constant 0 : i32
    return %arg2, %c0_i32, %c0_i32_0 : i32, i32, i32
  }
  func.func @transform_7(%arg0: i32, %arg1: i32, %arg2: i32) -> (i32, i32, i32) {
    %c0_i32 = arith.constant 0 : i32
    %c0_i32_0 = arith.constant 0 : i32
    %c0_i32_1 = arith.constant 0 : i32
    return %arg2, %c0_i32, %c0_i32_0 : i32, i32, i32
  }
  func.func @transform_8(%arg0: i32, %arg1: i32, %arg2: i32) -> (i32, i32, i32) {
    %c0_i32 = arith.constant 0 : i32
    %c0_i32_0 = arith.constant 0 : i32
    %c0_i32_1 = arith.constant 0 : i32
    return %arg2, %c0_i32, %c0_i32_0 : i32, i32, i32
  }
  func.func @transform_9(%arg0: i32, %arg1: i32, %arg2: i32) -> (i32, i32, i32) {
    %c0_i32 = arith.constant 0 : i32
    %c0_i32_0 = arith.constant 0 : i32
    %c0_i32_1 = arith.constant 0 : i32
    return %arg2, %c0_i32, %c0_i32_0 : i32, i32, i32
  }
  func.func @transform_10(%arg0: i32, %arg1: i32, %arg2: i32) -> (i32, i32, i32) {
    %c0_i32 = arith.constant 0 : i32
    %c0_i32_0 = arith.constant 0 : i32
    %c0_i32_1 = arith.constant 0 : i32
    return %arg2, %c0_i32, %c0_i32_0 : i32, i32, i32
  }
  func.func @transform_11(%arg0: i32, %arg1: i32, %arg2: i32) -> (i32, i32, i32) {
    %c0_i32 = arith.constant 0 : i32
    %c0_i32_0 = arith.constant 0 : i32
    %c0_i32_1 = arith.constant 0 : i32
    return %arg2, %c0_i32, %c0_i32_0 : i32, i32, i32
  }
  func.func @transform_12(%arg0: i32, %arg1: i32, %arg2: i32) -> (i32, i32, i32) {
    %c0_i32 = arith.constant 0 : i32
    %c0_i32_0 = arith.constant 0 : i32
    %c0_i32_1 = arith.constant 0 : i32
    return %arg2, %c0_i32, %c0_i32_0 : i32, i32, i32
  }
  func.func @transform_13(%arg0: i32, %arg1: i32, %arg2: i32) -> (i32, i32, i32) {
    %c0_i32 = arith.constant 0 : i32
    %c0_i32_0 = arith.constant 0 : i32
    %c0_i32_1 = arith.constant 0 : i32
    return %arg2, %c0_i32, %c0_i32_0 : i32, i32, i32
  }
  func.func @transform_14(%arg0: i32, %arg1: i32, %arg2: i32) -> (i32, i32, i32) {
    %c0_i32 = arith.constant 0 : i32
    %c0_i32_0 = arith.constant 0 : i32
    %c0_i32_1 = arith.constant 0 : i32
    return %arg2, %c0_i32, %c0_i32_0 : i32, i32, i32
  }
  func.func @transform_15(%arg0: i32, %arg1: i32, %arg2: i32) -> (i32, i32, i32) {
    %c0_i32 = arith.constant 0 : i32
    %c0_i32_0 = arith.constant 0 : i32
    %c0_i32_1 = arith.constant 0 : i32
    return %arg2, %c0_i32, %c0_i32_0 : i32, i32, i32
  }
  func.func @transform_16(%arg0: i32, %arg1: i32, %arg2: i32) -> (i32, i32, i32) {
    %c0_i32 = arith.constant 0 : i32
    %c0_i32_0 = arith.constant 0 : i32
    %c0_i32_1 = arith.constant 0 : i32
    return %arg2, %c0_i32, %c0_i32_0 : i32, i32, i32
  }
  func.func @transform_17(%arg0: i32, %arg1: i32, %arg2: i32) -> (i32, i32, i32) {
    %c0_i32 = arith.constant 0 : i32
    %c0_i32_0 = arith.constant 0 : i32
    %c0_i32_1 = arith.constant 0 : i32
    return %arg2, %c0_i32, %c0_i32_0 : i32, i32, i32
  }
  func.func @transform_18(%arg0: i32, %arg1: i32, %arg2: i32) -> (i32, i32) {
    %c0_i32 = arith.constant 0 : i32
    %c0_i32_0 = arith.constant 0 : i32
    %c0_i32_1 = arith.constant 0 : i32
    return %c0_i32, %c0_i32_0 : i32, i32
  }
  func.func @transform_19(%arg0: i32, %arg1: i32, %arg2: i32) -> (i32, i32) {
    %c0_i32 = arith.constant 0 : i32
    %c0_i32_0 = arith.constant 0 : i32
    %c0_i32_1 = arith.constant 0 : i32
    return %c0_i32, %c0_i32_0 : i32, i32
  }
  func.func @transform_20(%arg0: i32, %arg1: i32, %arg2: i32) -> (i32, i32, i32) {
    %c0_i32 = arith.constant 0 : i32
    %c0_i32_0 = arith.constant 0 : i32
    return %arg0, %arg1, %c0_i32 : i32, i32, i32
  }
  func.func @transform_21(%arg0: i32, %arg1: i32, %arg2: i32) -> (i32, i32, i32, i32, i32) {
    %c0_i32 = arith.constant 0 : i32
    %c0_i32_0 = arith.constant 0 : i32
    %c0_i32_1 = arith.constant 0 : i32
    return %arg0, %arg2, %c0_i32, %arg1, %c0_i32_0 : i32, i32, i32, i32, i32
  }
}

</mosaic_0001>

<llo_original>
// kernel: tpu_custom_call.1
$region0: #{tpu_custom_call.1}
  #allocation0 [shape = 'u32[]', space=smem, size = 0x4, offset = 0x4, fixed_abs, tag = 'smem constant byte address 0x4 - core index']
  #allocation1 [shape = 'u32[72,128]{1,0:T(1,128)}', space=vmem, size = 0x9000, scoped, tag = 'internal scratch']
  #allocation2 [shape = 'f32[8,16]{1,0:T(8,128)}', space=vmem, size = 0x1000, scoped, tag = 'scratch operand']
  %s0 = inlined_call_operand.hbm [shape: bf16[2,8,8], index: 0, kind: input, shape index: {}]
  %s1 = inlined_call_operand.hbm [shape: bf16[2,8,16], index: 1, kind: input, shape index: {}]
  %s2 = inlined_call_operand.hbm [shape: bf16[8,16], index: 2, kind: input, shape index: {}]
  %s3 = inlined_call_operand.hbm [shape: f32[1,16], index: 3, kind: input, shape index: {}]
  %s4 = inlined_call_operand.vmem [shape: bf16[2,16,16], index: 4, kind: input, shape index: {}]
  %s5 = inlined_call_operand.hbm [shape: f32[2,1,16], index: 5, kind: input, shape index: {}]
  %s6 = inlined_call_operand.vmem [shape: bf16[2,16,32], index: 6, kind: input, shape index: {}]
  %s7 = inlined_call_operand.hbm [shape: f32[2,1,32], index: 7, kind: input, shape index: {}]
  %s8 = inlined_call_operand.vmem [shape: bf16[2,16,16], index: 8, kind: input, shape index: {}]
  %s9 = inlined_call_operand.hbm [shape: f32[2,1,16], index: 9, kind: input, shape index: {}]
  %s10 = inlined_call_operand.hbm [shape: f32[2,1,16], index: 10, kind: input, shape index: {}]
  %s11 = inlined_call_operand.vmem [shape: f32[2,1,16], index: 11, kind: input, shape index: {}]
  %s12 = inlined_call_operand.hbm [shape: bf16[2,16,32], index: 12, kind: input, shape index: {}]
  %s13 = inlined_call_operand.vmem [shape: f32[2,1,32], index: 13, kind: input, shape index: {}]
  %s14 = inlined_call_operand.vmem [shape: bf16[2,32,16], index: 14, kind: input, shape index: {}]
  %s15 = inlined_call_operand.vmem [shape: f32[2,1,16], index: 15, kind: input, shape index: {}]
  %s16 = inlined_call_operand.hbm [shape: f32[2,1,16], index: 16, kind: input, shape index: {}]
  %s17 = inlined_call_operand.vmem [shape: f32[2,1,16], index: 17, kind: input, shape index: {}]
  %s18 = inlined_call_operand.vmem [shape: bf16[16,128], index: 18, kind: input, shape index: {}]
  %s19 = inlined_call_operand.vmem [shape: f32[1,128], index: 19, kind: input, shape index: {}]
  %s20 = inlined_call_operand.hbm [shape: f32[2,8,128], index: 20, kind: output, shape index: {0}]
  %s21 = inlined_call_operand.hbm [shape: f32[2,2,2,8,8], index: 21, kind: output, shape index: {1}]
  %22 = xla_tuple %s20, %s21
  %s23 = sld [smem:[#allocation0]]
  $region169: #{tpu_custom_call.1} parent=0
    _
  %s25 = ssub.s32 1, %s23
  %s26 = scalar_select 0, %s25, %s23
  $region1: #{tpu_custom_call.1} parent=0
    #allocation3 [shape = 'u8[4096]{0}', space=vmem, size = 0x1000, scoped, tag = 'input window, operand 0']
    #allocation4 [shape = 's32[2]{0}', space=sflag, size = 0x8, scoped, tag = 'scoped memory for tpu_custom_call.1']
    #allocation5 [shape = 's32[2]{0}', space=sflag, size = 0x8, scoped, tag = 'scoped memory for tpu_custom_call.1']
    #allocation6 [shape = 'u8[4096]{0}', space=vmem, size = 0x1000, scoped, tag = 'input window, operand 1']
    #allocation7 [shape = 's32[2]{0}', space=sflag, size = 0x8, scoped, tag = 'scoped memory for tpu_custom_call.1']
    #allocation8 [shape = 'u8[2048]{0}', space=vmem, size = 0x800, scoped, tag = 'input window, operand 2, single buffered']
    #allocation9 [shape = 'u8[512]{0}', space=vmem, size = 0x400, scoped, tag = 'input window, operand 3, single buffered']
    #allocation10 [shape = 's32[1]{0}', space=sflag, size = 0x4, scoped, tag = 'scoped memory for tpu_custom_call.1']
    #allocation11 [shape = 'u8[1024]{0}', space=vmem, size = 0x400, scoped, tag = 'input window, operand 5']
    #allocation12 [shape = 'u8[1024]{0}', space=vmem, size = 0x400, scoped, tag = 'input window, operand 7']
    #allocation13 [shape = 'u8[1024]{0}', space=vmem, size = 0x400, scoped, tag = 'input window, operand 9']
    #allocation14 [shape = 'u8[1024]{0}', space=vmem, size = 0x400, scoped, tag = 'input window, operand 10']
    #allocation15 [shape = 'u8[8192]{0}', space=vmem, size = 0x2000, scoped, tag = 'input window, operand 12']
    #allocation16 [shape = 'u8[1024]{0}', space=vmem, size = 0x400, scoped, tag = 'input window, operand 16']
    #allocation17 [shape = 'u8[8192]{0}', space=vmem, size = 0x2000, scoped, tag = 'output window, operand 0']
    #allocation18 [shape = 'u8[16384]{0}', space=vmem, size = 0x4000, scoped, tag = 'output window, operand 1']
    #allocation19 [shape = 's32[2]{0}', space=sflag, size = 0x8, scoped, tag = 'scoped memory for tpu_custom_call.1']
    %27 = vsyncpa [#allocation4], 0
    %s28 = scalar_lea.sflag [#allocation4], 1
    %29 = vsyncpa %s28, 0
    %30 = vsyncpa [#allocation7], 0
    %s31 = scalar_lea.sflag [#allocation7], 1
    %32 = vsyncpa %s31, 0
    %33 = vsyncpa [#allocation10], 0
    %34 = vsyncpa [#allocation5], 0
    %s35 = scalar_lea.sflag [#allocation5], 1
    %36 = vsyncpa %s35, 0
    %37 = vsyncpa [#allocation19], 0
    %s38 = scalar_lea.sflag [#allocation19], 1
    %39 = vsyncpa %s38, 0
    loop: start=0, step=1, limit=6
    $region2: #{tpu_custom_call.1} parent=1 // loop_pre_header
      _
    $region3: #{tpu_custom_call.1} parent=1 // loop_header
      %s41 = sphi 0, %s45
      %p42 = scmp.ge.s32.totalorder %s41, 6
      %s48 = sphi 0, %s67
      %s49 = sphi 0, %s63
      %s50 = sphi 0, %s59
      %s51 = sphi 0, %s48
      %s52 = sphi 0, %s49
      %s53 = sphi 0, %s50
      %s54 = sphi 0, %s51
      %s55 = sphi 0, %s52
      %s56 = sphi 0, %s53
      %s72 = sphi 0, %s74
      %s75 = sphi 0, %s72
      %s76 = sphi 0, %s75
      %s92 = sphi 0, %s76
      %s98 = sphi 0, %s100
      %s101 = sphi 0, %s98
      %s102 = sphi 0, %s101
      %s118 = sphi 0, %s102
      %s122 = sphi 0, %s122
      %s124 = sphi 0, %s122
      %s125 = sphi 0, %s124
      %s139 = sphi 0, %s125
      %s143 = sphi 0, %s143
      %s145 = sphi 0, %s143
      %s146 = sphi 0, %s145
      %s160 = sphi 0, %s146
      %s166 = sphi 0, %s168
      %s169 = sphi 0, %s166
      %s170 = sphi 0, %s169
      %s186 = sphi 0, %s170
      %s192 = sphi 0, %s194
      %s195 = sphi 0, %s192
      %s196 = sphi 0, %s195
      %s212 = sphi 0, %s196
      %s218 = sphi 0, %s220
      %s221 = sphi 0, %s218
      %s222 = sphi 0, %s221
      %s238 = sphi 0, %s222
      %s244 = sphi 0, %s246
      %s247 = sphi 0, %s244
      %s248 = sphi 0, %s247
      %s264 = sphi 0, %s248
      %s270 = sphi 0, %s272
      %s273 = sphi 0, %s270
      %s274 = sphi 0, %s273
      %s290 = sphi 0, %s274
      %s296 = sphi 0, %s298
      %s299 = sphi 0, %s296
      %s300 = sphi 0, %s299
      %s316 = sphi 0, %s300
      %s322 = sphi 0, %s324
      %s325 = sphi 0, %s322
      %s326 = sphi 0, %s325
      %s342 = sphi 0, %s326
      %s348 = sphi 0, %s350
      %s351 = sphi 0, %s348
      %s352 = sphi 0, %s351
      %s368 = sphi 0, %s352
      %s374 = sphi 0, %s376
      %s377 = sphi 0, %s374
      %s378 = sphi 0, %s377
      %s394 = sphi 0, %s378
      %s400 = sphi 0, %s402
      %s403 = sphi 0, %s400
      %s404 = sphi 0, %s403
      %s420 = sphi 0, %s404
      %s426 = sphi 0, %s428
      %s429 = sphi 0, %s426
      %s430 = sphi 0, %s429
      %s446 = sphi 0, %s430
      %s452 = sphi 0, %s454
      %s455 = sphi 0, %s452
      %s456 = sphi 0, %s455
      %s472 = sphi 0, %s456
      %s478 = sphi 0, %s480
      %s481 = sphi 0, %s478
      %s482 = sphi 0, %s481
      %s498 = sphi 0, %s482
      %s504 = sphi 0, %s506
      %s507 = sphi 0, %s504
      %s508 = sphi 0, %s507
      %s524 = sphi 0, %s508
      %s528 = sphi 0, %s528
      %s530 = sphi 0, %s528
      %s531 = sphi 0, %s530
      %s545 = sphi 0, %s531
      %s549 = sphi 0, %s549
      %s551 = sphi 0, %s549
      %s552 = sphi 0, %s551
      %s566 = sphi 0, %s552
      %s574 = sphi 0, %s576
      %s577 = sphi 0, %s574
      %s578 = sphi 0, %s577
      %s594 = sphi 0, %s578
      %s604 = sphi 0, %s606
      %s607 = sphi 0, %s604
      %s608 = sphi 0, %s607
      %s624 = sphi 0, %s608
    $region4: #{tpu_custom_call.1} parent=1 // loop_header_branch
      %44 = sbr.rel (%p42) target = $region8
    $region5: #{tpu_custom_call.1} parent=1 // loop_body
      %s46 = ssub.s32 %s41, 1
      %s47 = ssub.s32 %s41, 2
      %s57 = sadd.s32 1, %s50
      %p58 = scmp.ge.s32.totalorder %s57, 2
      %s59 = scalar_select %p58, 0, %s57
      %s60 = sadd.s32 1, %s49
      %s61 = scalar_select %p58, %s60, %s49
      %p62 = scmp.ge.s32.totalorder %s61, 1
      %s63 = scalar_select %p62, 0, %s61
      %s64 = sadd.s32 1, %s48
      %s65 = scalar_select %p62, %s64, %s48
      %p66 = scmp.ge.s32.totalorder %s65, 2
      %s67 = scalar_select %p66, 0, %s65
      %s68 = ssub.s32 %s48, %s67
      %s69 = ssub.s32 %s49, %s63
      %s70 = sor.u32 %s68, %s69
      %p71 = scmp.eq.s32.totalorder %s70, 0
      %s73 = sadd.s32 %s72, 1
      %s74 = scalar_select %p71, %s72, %s73
      %p77 = pneg %p71
      %p78 = scmp.eq.s32.totalorder %s41, 3
      %p79 = por %p77, %p78
      %p80 = scmp.ne.s32.totalorder %s72, %s75
      %p81 = scmp.eq.s32.totalorder %s41, 0
      %p82 = por %p80, %p81
      %p83 = scmp.ne.s32.totalorder %s72, %s75
      %p84 = scmp.eq.s32.totalorder %s46, 3
      %p85 = por %p83, %p84
      %p86 = scmp.ne.s32.totalorder %s75, %s76
      %p87 = scmp.eq.s32.totalorder %s46, 0
      %p88 = por %p86, %p87
      %p89 = scmp.ne.s32.totalorder %s75, %s76
      %p90 = scmp.eq.s32.totalorder %s47, 3
      %p91 = por %p89, %p90
      %p93 = scmp.ne.s32.totalorder %s76, %s92
      %p94 = scmp.eq.s32.totalorder %s47, 0
      %p95 = por %p93, %p94
      %s96 = ssub.s32 %s48, %s67
      %p97 = scmp.eq.s32.totalorder %s96, 0
      %s99 = sadd.s32 %s98, 1
      %s100 = scalar_select %p97, %s98, %s99
      %p103 = pneg %p97
      %p104 = scmp.eq.s32.totalorder %s41, 3
      %p105 = por %p103, %p104
      %p106 = scmp.ne.s32.totalorder %s98, %s101
      %p107 = scmp.eq.s32.totalorder %s41, 0
      %p108 = por %p106, %p107
      %p109 = scmp.ne.s32.totalorder %s98, %s101
      %p110 = scmp.eq.s32.totalorder %s46, 3
      %p111 = por %p109, %p110
      %p112 = scmp.ne.s32.totalorder %s101, %s102
      %p113 = scmp.eq.s32.totalorder %s46, 0
      %p114 = por %p112, %p113
      %p115 = scmp.ne.s32.totalorder %s101, %s102
      %p116 = scmp.eq.s32.totalorder %s47, 3
      %p117 = por %p115, %p116
      %p119 = scmp.ne.s32.totalorder %s102, %s118
      %p120 = scmp.eq.s32.totalorder %s47, 0
      %p121 = por %p119, %p120
      %s123 = sadd.s32 %s122, 1
      %p126 = scmp.eq.s32.totalorder %s41, 3
      %p127 = scmp.ne.s32.totalorder %s122, %s124
      %p128 = scmp.eq.s32.totalorder %s41, 0
      %p129 = por %p127, %p128
      %p130 = scmp.ne.s32.totalorder %s122, %s124
      %p131 = scmp.eq.s32.totalorder %s46, 3
      %p132 = por %p130, %p131
      %p133 = scmp.ne.s32.totalorder %s124, %s125
      %p134 = scmp.eq.s32.totalorder %s46, 0
      %p135 = por %p133, %p134
      %p136 = scmp.ne.s32.totalorder %s124, %s125
      %p137 = scmp.eq.s32.totalorder %s47, 3
      %p138 = por %p136, %p137
      %p140 = scmp.ne.s32.totalorder %s125, %s139
      %p141 = scmp.eq.s32.totalorder %s47, 0
      %p142 = por %p140, %p141
      %s144 = sadd.s32 %s143, 1
      %p147 = scmp.eq.s32.totalorder %s41, 3
      %p148 = scmp.ne.s32.totalorder %s143, %s145
      %p149 = scmp.eq.s32.totalorder %s41, 0
      %p150 = por %p148, %p149
      %p151 = scmp.ne.s32.totalorder %s143, %s145
      %p152 = scmp.eq.s32.totalorder %s46, 3
      %p153 = por %p151, %p152
      %p154 = scmp.ne.s32.totalorder %s145, %s146
      %p155 = scmp.eq.s32.totalorder %s46, 0
      %p156 = por %p154, %p155
      %p157 = scmp.ne.s32.totalorder %s145, %s146
      %p158 = scmp.eq.s32.totalorder %s47, 3
      %p159 = por %p157, %p158
      %p161 = scmp.ne.s32.totalorder %s146, %s160
      %p162 = scmp.eq.s32.totalorder %s47, 0
      %p163 = por %p161, %p162
      %s164 = ssub.s32 %s50, %s59
      %p165 = scmp.eq.s32.totalorder %s164, 0
      %s167 = sadd.s32 %s166, 1
      %s168 = scalar_select %p165, %s166, %s167
      %p171 = pneg %p165
      %p172 = scmp.eq.s32.totalorder %s41, 3
      %p173 = por %p171, %p172
      %p174 = scmp.ne.s32.totalorder %s166, %s169
      %p175 = scmp.eq.s32.totalorder %s41, 0
      %p176 = por %p174, %p175
      %p177 = scmp.ne.s32.totalorder %s166, %s169
      %p178 = scmp.eq.s32.totalorder %s46, 3
      %p179 = por %p177, %p178
      %p180 = scmp.ne.s32.totalorder %s169, %s170
      %p181 = scmp.eq.s32.totalorder %s46, 0
      %p182 = por %p180, %p181
      %p183 = scmp.ne.s32.totalorder %s169, %s170
      %p184 = scmp.eq.s32.totalorder %s47, 3
      %p185 = por %p183, %p184
      %p187 = scmp.ne.s32.totalorder %s170, %s186
      %p188 = scmp.eq.s32.totalorder %s47, 0
      %p189 = por %p187, %p188
      %s190 = ssub.s32 %s50, %s59
      %p191 = scmp.eq.s32.totalorder %s190, 0
      %s193 = sadd.s32 %s192, 1
      %s194 = scalar_select %p191, %s192, %s193
      %p197 = pneg %p191
      %p198 = scmp.eq.s32.totalorder %s41, 3
      %p199 = por %p197, %p198
      %p200 = scmp.ne.s32.totalorder %s192, %s195
      %p201 = scmp.eq.s32.totalorder %s41, 0
      %p202 = por %p200, %p201
      %p203 = scmp.ne.s32.totalorder %s192, %s195
      %p204 = scmp.eq.s32.totalorder %s46, 3
      %p205 = por %p203, %p204
      %p206 = scmp.ne.s32.totalorder %s195, %s196
      %p207 = scmp.eq.s32.totalorder %s46, 0
      %p208 = por %p206, %p207
      %p209 = scmp.ne.s32.totalorder %s195, %s196
      %p210 = scmp.eq.s32.totalorder %s47, 3
      %p211 = por %p209, %p210
      %p213 = scmp.ne.s32.totalorder %s196, %s212
      %p214 = scmp.eq.s32.totalorder %s47, 0
      %p215 = por %p213, %p214
      %s216 = ssub.s32 %s50, %s59
      %p217 = scmp.eq.s32.totalorder %s216, 0
      %s219 = sadd.s32 %s218, 1
      %s220 = scalar_select %p217, %s218, %s219
      %p223 = pneg %p217
      %p224 = scmp.eq.s32.totalorder %s41, 3
      %p225 = por %p223, %p224
      %p226 = scmp.ne.s32.totalorder %s218, %s221
      %p227 = scmp.eq.s32.totalorder %s41, 0
      %p228 = por %p226, %p227
      %p229 = scmp.ne.s32.totalorder %s218, %s221
      %p230 = scmp.eq.s32.totalorder %s46, 3
      %p231 = por %p229, %p230
      %p232 = scmp.ne.s32.totalorder %s221, %s222
      %p233 = scmp.eq.s32.totalorder %s46, 0
      %p234 = por %p232, %p233
      %p235 = scmp.ne.s32.totalorder %s221, %s222
      %p236 = scmp.eq.s32.totalorder %s47, 3
      %p237 = por %p235, %p236
      %p239 = scmp.ne.s32.totalorder %s222, %s238
      %p240 = scmp.eq.s32.totalorder %s47, 0
      %p241 = por %p239, %p240
      %s242 = ssub.s32 %s50, %s59
      %p243 = scmp.eq.s32.totalorder %s242, 0
      %s245 = sadd.s32 %s244, 1
      %s246 = scalar_select %p243, %s244, %s245
      %p249 = pneg %p243
      %p250 = scmp.eq.s32.totalorder %s41, 3
      %p251 = por %p249, %p250
      %p252 = scmp.ne.s32.totalorder %s244, %s247
      %p253 = scmp.eq.s32.totalorder %s41, 0
      %p254 = por %p252, %p253
      %p255 = scmp.ne.s32.totalorder %s244, %s247
      %p256 = scmp.eq.s32.totalorder %s46, 3
      %p257 = por %p255, %p256
      %p258 = scmp.ne.s32.totalorder %s247, %s248
      %p259 = scmp.eq.s32.totalorder %s46, 0
      %p260 = por %p258, %p259
      %p261 = scmp.ne.s32.totalorder %s247, %s248
      %p262 = scmp.eq.s32.totalorder %s47, 3
      %p263 = por %p261, %p262
      %p265 = scmp.ne.s32.totalorder %s248, %s264
      %p266 = scmp.eq.s32.totalorder %s47, 0
      %p267 = por %p265, %p266
      %s268 = ssub.s32 %s50, %s59
      %p269 = scmp.eq.s32.totalorder %s268, 0
      %s271 = sadd.s32 %s270, 1
      %s272 = scalar_select %p269, %s270, %s271
      %p275 = pneg %p269
      %p276 = scmp.eq.s32.totalorder %s41, 3
      %p277 = por %p275, %p276
      %p278 = scmp.ne.s32.totalorder %s270, %s273
      %p279 = scmp.eq.s32.totalorder %s41, 0
      %p280 = por %p278, %p279
      %p281 = scmp.ne.s32.totalorder %s270, %s273
      %p282 = scmp.eq.s32.totalorder %s46, 3
      %p283 = por %p281, %p282
      %p284 = scmp.ne.s32.totalorder %s273, %s274
      %p285 = scmp.eq.s32.totalorder %s46, 0
      %p286 = por %p284, %p285
      %p287 = scmp.ne.s32.totalorder %s273, %s274
      %p288 = scmp.eq.s32.totalorder %s47, 3
      %p289 = por %p287, %p288
      %p291 = scmp.ne.s32.totalorder %s274, %s290
      %p292 = scmp.eq.s32.totalorder %s47, 0
      %p293 = por %p291, %p292
      %s294 = ssub.s32 %s50, %s59
      %p295 = scmp.eq.s32.totalorder %s294, 0
      %s297 = sadd.s32 %s296, 1
      %s298 = scalar_select %p295, %s296, %s297
      %p301 = pneg %p295
      %p302 = scmp.eq.s32.totalorder %s41, 3
      %p303 = por %p301, %p302
      %p304 = scmp.ne.s32.totalorder %s296, %s299
      %p305 = scmp.eq.s32.totalorder %s41, 0
      %p306 = por %p304, %p305
      %p307 = scmp.ne.s32.totalorder %s296, %s299
      %p308 = scmp.eq.s32.totalorder %s46, 3
      %p309 = por %p307, %p308
      %p310 = scmp.ne.s32.totalorder %s299, %s300
      %p311 = scmp.eq.s32.totalorder %s46, 0
      %p312 = por %p310, %p311
      %p313 = scmp.ne.s32.totalorder %s299, %s300
      %p314 = scmp.eq.s32.totalorder %s47, 3
      %p315 = por %p313, %p314
      %p317 = scmp.ne.s32.totalorder %s300, %s316
      %p318 = scmp.eq.s32.totalorder %s47, 0
      %p319 = por %p317, %p318
      %s320 = ssub.s32 %s50, %s59
      %p321 = scmp.eq.s32.totalorder %s320, 0
      %s323 = sadd.s32 %s322, 1
      %s324 = scalar_select %p321, %s322, %s323
      %p327 = pneg %p321
      %p328 = scmp.eq.s32.totalorder %s41, 3
      %p329 = por %p327, %p328
      %p330 = scmp.ne.s32.totalorder %s322, %s325
      %p331 = scmp.eq.s32.totalorder %s41, 0
      %p332 = por %p330, %p331
      %p333 = scmp.ne.s32.totalorder %s322, %s325
      %p334 = scmp.eq.s32.totalorder %s46, 3
      %p335 = por %p333, %p334
      %p336 = scmp.ne.s32.totalorder %s325, %s326
      %p337 = scmp.eq.s32.totalorder %s46, 0
      %p338 = por %p336, %p337
      %p339 = scmp.ne.s32.totalorder %s325, %s326
      %p340 = scmp.eq.s32.totalorder %s47, 3
      %p341 = por %p339, %p340
      %p343 = scmp.ne.s32.totalorder %s326, %s342
      %p344 = scmp.eq.s32.totalorder %s47, 0
      %p345 = por %p343, %p344
      %s346 = ssub.s32 %s50, %s59
      %p347 = scmp.eq.s32.totalorder %s346, 0
      %s349 = sadd.s32 %s348, 1
      %s350 = scalar_select %p347, %s348, %s349
      %p353 = pneg %p347
      %p354 = scmp.eq.s32.totalorder %s41, 3
      %p355 = por %p353, %p354
      %p356 = scmp.ne.s32.totalorder %s348, %s351
      %p357 = scmp.eq.s32.totalorder %s41, 0
      %p358 = por %p356, %p357
      %p359 = scmp.ne.s32.totalorder %s348, %s351
      %p360 = scmp.eq.s32.totalorder %s46, 3
      %p361 = por %p359, %p360
      %p362 = scmp.ne.s32.totalorder %s351, %s352
      %p363 = scmp.eq.s32.totalorder %s46, 0
      %p364 = por %p362, %p363
      %p365 = scmp.ne.s32.totalorder %s351, %s352
      %p366 = scmp.eq.s32.totalorder %s47, 3
      %p367 = por %p365, %p366
      %p369 = scmp.ne.s32.totalorder %s352, %s368
      %p370 = scmp.eq.s32.totalorder %s47, 0
      %p371 = por %p369, %p370
      %s372 = ssub.s32 %s50, %s59
      %p373 = scmp.eq.s32.totalorder %s372, 0
      %s375 = sadd.s32 %s374, 1
      %s376 = scalar_select %p373, %s374, %s375
      %p379 = pneg %p373
      %p380 = scmp.eq.s32.totalorder %s41, 3
      %p381 = por %p379, %p380
      %p382 = scmp.ne.s32.totalorder %s374, %s377
      %p383 = scmp.eq.s32.totalorder %s41, 0
      %p384 = por %p382, %p383
      %p385 = scmp.ne.s32.totalorder %s374, %s377
      %p386 = scmp.eq.s32.totalorder %s46, 3
      %p387 = por %p385, %p386
      %p388 = scmp.ne.s32.totalorder %s377, %s378
      %p389 = scmp.eq.s32.totalorder %s46, 0
      %p390 = por %p388, %p389
      %p391 = scmp.ne.s32.totalorder %s377, %s378
      %p392 = scmp.eq.s32.totalorder %s47, 3
      %p393 = por %p391, %p392
      %p395 = scmp.ne.s32.totalorder %s378, %s394
      %p396 = scmp.eq.s32.totalorder %s47, 0
      %p397 = por %p395, %p396
      %s398 = ssub.s32 %s50, %s59
      %p399 = scmp.eq.s32.totalorder %s398, 0
      %s401 = sadd.s32 %s400, 1
      %s402 = scalar_select %p399, %s400, %s401
      %p405 = pneg %p399
      %p406 = scmp.eq.s32.totalorder %s41, 3
      %p407 = por %p405, %p406
      %p408 = scmp.ne.s32.totalorder %s400, %s403
      %p409 = scmp.eq.s32.totalorder %s41, 0
      %p410 = por %p408, %p409
      %p411 = scmp.ne.s32.totalorder %s400, %s403
      %p412 = scmp.eq.s32.totalorder %s46, 3
      %p413 = por %p411, %p412
      %p414 = scmp.ne.s32.totalorder %s403, %s404
      %p415 = scmp.eq.s32.totalorder %s46, 0
      %p416 = por %p414, %p415
      %p417 = scmp.ne.s32.totalorder %s403, %s404
      %p418 = scmp.eq.s32.totalorder %s47, 3
      %p419 = por %p417, %p418
      %p421 = scmp.ne.s32.totalorder %s404, %s420
      %p422 = scmp.eq.s32.totalorder %s47, 0
      %p423 = por %p421, %p422
      %s424 = ssub.s32 %s50, %s59
      %p425 = scmp.eq.s32.totalorder %s424, 0
      %s427 = sadd.s32 %s426, 1
      %s428 = scalar_select %p425, %s426, %s427
      %p431 = pneg %p425
      %p432 = scmp.eq.s32.totalorder %s41, 3
      %p433 = por %p431, %p432
      %p434 = scmp.ne.s32.totalorder %s426, %s429
      %p435 = scmp.eq.s32.totalorder %s41, 0
      %p436 = por %p434, %p435
      %p437 = scmp.ne.s32.totalorder %s426, %s429
      %p438 = scmp.eq.s32.totalorder %s46, 3
      %p439 = por %p437, %p438
      %p440 = scmp.ne.s32.totalorder %s429, %s430
      %p441 = scmp.eq.s32.totalorder %s46, 0
      %p442 = por %p440, %p441
      %p443 = scmp.ne.s32.totalorder %s429, %s430
      %p444 = scmp.eq.s32.totalorder %s47, 3
      %p445 = por %p443, %p444
      %p447 = scmp.ne.s32.totalorder %s430, %s446
      %p448 = scmp.eq.s32.totalorder %s47, 0
      %p449 = por %p447, %p448
      %s450 = ssub.s32 %s50, %s59
      %p451 = scmp.eq.s32.totalorder %s450, 0
      %s453 = sadd.s32 %s452, 1
      %s454 = scalar_select %p451, %s452, %s453
      %p457 = pneg %p451
      %p458 = scmp.eq.s32.totalorder %s41, 3
      %p459 = por %p457, %p458
      %p460 = scmp.ne.s32.totalorder %s452, %s455
      %p461 = scmp.eq.s32.totalorder %s41, 0
      %p462 = por %p460, %p461
      %p463 = scmp.ne.s32.totalorder %s452, %s455
      %p464 = scmp.eq.s32.totalorder %s46, 3
      %p465 = por %p463, %p464
      %p466 = scmp.ne.s32.totalorder %s455, %s456
      %p467 = scmp.eq.s32.totalorder %s46, 0
      %p468 = por %p466, %p467
      %p469 = scmp.ne.s32.totalorder %s455, %s456
      %p470 = scmp.eq.s32.totalorder %s47, 3
      %p471 = por %p469, %p470
      %p473 = scmp.ne.s32.totalorder %s456, %s472
      %p474 = scmp.eq.s32.totalorder %s47, 0
      %p475 = por %p473, %p474
      %s476 = ssub.s32 %s50, %s59
      %p477 = scmp.eq.s32.totalorder %s476, 0
      %s479 = sadd.s32 %s478, 1
      %s480 = scalar_select %p477, %s478, %s479
      %p483 = pneg %p477
      %p484 = scmp.eq.s32.totalorder %s41, 3
      %p485 = por %p483, %p484
      %p486 = scmp.ne.s32.totalorder %s478, %s481
      %p487 = scmp.eq.s32.totalorder %s41, 0
      %p488 = por %p486, %p487
      %p489 = scmp.ne.s32.totalorder %s478, %s481
      %p490 = scmp.eq.s32.totalorder %s46, 3
      %p491 = por %p489, %p490
      %p492 = scmp.ne.s32.totalorder %s481, %s482
      %p493 = scmp.eq.s32.totalorder %s46, 0
      %p494 = por %p492, %p493
      %p495 = scmp.ne.s32.totalorder %s481, %s482
      %p496 = scmp.eq.s32.totalorder %s47, 3
      %p497 = por %p495, %p496
      %p499 = scmp.ne.s32.totalorder %s482, %s498
      %p500 = scmp.eq.s32.totalorder %s47, 0
      %p501 = por %p499, %p500
      %s502 = ssub.s32 %s50, %s59
      %p503 = scmp.eq.s32.totalorder %s502, 0
      %s505 = sadd.s32 %s504, 1
      %s506 = scalar_select %p503, %s504, %s505
      %p509 = pneg %p503
      %p510 = scmp.eq.s32.totalorder %s41, 3
      %p511 = por %p509, %p510
      %p512 = scmp.ne.s32.totalorder %s504, %s507
      %p513 = scmp.eq.s32.totalorder %s41, 0
      %p514 = por %p512, %p513
      %p515 = scmp.ne.s32.totalorder %s504, %s507
      %p516 = scmp.eq.s32.totalorder %s46, 3
      %p517 = por %p515, %p516
      %p518 = scmp.ne.s32.totalorder %s507, %s508
      %p519 = scmp.eq.s32.totalorder %s46, 0
      %p520 = por %p518, %p519
      %p521 = scmp.ne.s32.totalorder %s507, %s508
      %p522 = scmp.eq.s32.totalorder %s47, 3
      %p523 = por %p521, %p522
      %p525 = scmp.ne.s32.totalorder %s508, %s524
      %p526 = scmp.eq.s32.totalorder %s47, 0
      %p527 = por %p525, %p526
      %s529 = sadd.s32 %s528, 1
      %p532 = scmp.eq.s32.totalorder %s41, 3
      %p533 = scmp.ne.s32.totalorder %s528, %s530
      %p534 = scmp.eq.s32.totalorder %s41, 0
      %p535 = por %p533, %p534
      %p536 = scmp.ne.s32.totalorder %s528, %s530
      %p537 = scmp.eq.s32.totalorder %s46, 3
      %p538 = por %p536, %p537
      %p539 = scmp.ne.s32.totalorder %s530, %s531
      %p540 = scmp.eq.s32.totalorder %s46, 0
      %p541 = por %p539, %p540
      %p542 = scmp.ne.s32.totalorder %s530, %s531
      %p543 = scmp.eq.s32.totalorder %s47, 3
      %p544 = por %p542, %p543
      %p546 = scmp.ne.s32.totalorder %s531, %s545
      %p547 = scmp.eq.s32.totalorder %s47, 0
      %p548 = por %p546, %p547
      %s550 = sadd.s32 %s549, 1
      %p553 = scmp.eq.s32.totalorder %s41, 3
      %p554 = scmp.ne.s32.totalorder %s549, %s551
      %p555 = scmp.eq.s32.totalorder %s41, 0
      %p556 = por %p554, %p555
      %p557 = scmp.ne.s32.totalorder %s549, %s551
      %p558 = scmp.eq.s32.totalorder %s46, 3
      %p559 = por %p557, %p558
      %p560 = scmp.ne.s32.totalorder %s551, %s552
      %p561 = scmp.eq.s32.totalorder %s46, 0
      %p562 = por %p560, %p561
      %p563 = scmp.ne.s32.totalorder %s551, %s552
      %p564 = scmp.eq.s32.totalorder %s47, 3
      %p565 = por %p563, %p564
      %p567 = scmp.ne.s32.totalorder %s552, %s566
      %p568 = scmp.eq.s32.totalorder %s47, 0
      %p569 = por %p567, %p568
      %s570 = ssub.s32 %s48, %s67
      %s571 = ssub.s32 %s49, %s63
      %s572 = sor.u32 %s570, %s571
      %p573 = scmp.eq.s32.totalorder %s572, 0
      %s575 = sadd.s32 %s574, 1
      %s576 = scalar_select %p573, %s574, %s575
      %p579 = pneg %p573
      %p580 = scmp.eq.s32.totalorder %s41, 3
      %p581 = por %p579, %p580
      %p582 = scmp.ne.s32.totalorder %s574, %s577
      %p583 = scmp.eq.s32.totalorder %s41, 0
      %p584 = por %p582, %p583
      %p585 = scmp.ne.s32.totalorder %s574, %s577
      %p586 = scmp.eq.s32.totalorder %s46, 3
      %p587 = por %p585, %p586
      %p588 = scmp.ne.s32.totalorder %s577, %s578
      %p589 = scmp.eq.s32.totalorder %s46, 0
      %p590 = por %p588, %p589
      %p591 = scmp.ne.s32.totalorder %s577, %s578
      %p592 = scmp.eq.s32.totalorder %s47, 3
      %p593 = por %p591, %p592
      %p595 = scmp.ne.s32.totalorder %s578, %s594
      %p596 = scmp.eq.s32.totalorder %s47, 0
      %p597 = por %p595, %p596
      %s598 = ssub.s32 %s48, %s67
      %s599 = ssub.s32 %s50, %s59
      %s600 = sor.u32 %s598, %s599
      %s601 = ssub.s32 %s49, %s63
      %s602 = sor.u32 %s600, %s601
      %p603 = scmp.eq.s32.totalorder %s602, 0
      %s605 = sadd.s32 %s604, 1
      %s606 = scalar_select %p603, %s604, %s605
      %p609 = pneg %p603
      %p610 = scmp.eq.s32.totalorder %s41, 3
      %p611 = por %p609, %p610
      %p612 = scmp.ne.s32.totalorder %s604, %s607
      %p613 = scmp.eq.s32.totalorder %s41, 0
      %p614 = por %p612, %p613
      %p615 = scmp.ne.s32.totalorder %s604, %s607
      %p616 = scmp.eq.s32.totalorder %s46, 3
      %p617 = por %p615, %p616
      %p618 = scmp.ne.s32.totalorder %s607, %s608
      %p619 = scmp.eq.s32.totalorder %s46, 0
      %p620 = por %p618, %p619
      %p621 = scmp.ne.s32.totalorder %s607, %s608
      %p622 = scmp.eq.s32.totalorder %s47, 3
      %p623 = por %p621, %p622
      %p625 = scmp.ne.s32.totalorder %s608, %s624
      %p626 = scmp.eq.s32.totalorder %s47, 0
      %p627 = por %p625, %p626
      %p628 = scmp.le.s32.totalorder 1, %s41
      %p629 = scmp.lt.s32.totalorder %s41, 5
      %p630 = pnand %p628, %p629
      %p631 = pneg %p630
      // Predicated region
      $region9: #{tpu_custom_call.1} parent=5 // pred_check
        _
      $region10: #{tpu_custom_call.1} parent=5 // pred_check_branch
        %633 = sbr.rel (%p630) target = $region12
      $region11: #{tpu_custom_call.1} parent=5 // pred_region
        %s634 = ssub.s32 %s41, 1
        // Predicated region
        $region13: #{tpu_custom_call.1} parent=11 // pred_check
          %p635 = pneg %p135
        $region14: #{tpu_custom_call.1} parent=11 // pred_check_branch
          %637 = sbr.rel (%p635) target = $region16
        $region15: #{tpu_custom_call.1} parent=11 // pred_region
          %639 = vsyncadd [#allocation7], 0
          %s641 = sshll.u32 %s2, 4
          %s642 = int_to_ptr.hbm [resolvable:$true] %s641
          %s643 = sshll.u32 [#allocation8], 4
          %s644 = int_to_ptr.vmem [resolvable:$true] %s643
          %646 = dma.hbm_to_vmem [thread:$0]  %s642, 64, %s644, [#allocation7]
        $region16: #{tpu_custom_call.1} parent=11 // pred_fallthru
          _
        // Predicated region
        $region17: #{tpu_custom_call.1} parent=11 // pred_check
          %p647 = pneg %p156
        $region18: #{tpu_custom_call.1} parent=11 // pred_check_branch
          %649 = sbr.rel (%p647) target = $region20
        $region19: #{tpu_custom_call.1} parent=11 // pred_region
          %651 = vsyncadd [#allocation10], 0
          %s653 = sshll.u32 %s3, 4
          %s654 = int_to_ptr.hbm [resolvable:$true] %s653
          %s655 = sshll.u32 [#allocation9], 4
          %s656 = int_to_ptr.vmem [resolvable:$true] %s655
          %658 = dma.hbm_to_vmem [thread:$0]  %s654, 16, %s656, [#allocation10]
        $region20: #{tpu_custom_call.1} parent=11 // pred_fallthru
          _
        // Predicated region
        $region21: #{tpu_custom_call.1} parent=11 // pred_check
          %p659 = pneg %p541
        $region22: #{tpu_custom_call.1} parent=11 // pred_check_branch
          %661 = sbr.rel (%p659) target = $region24
        $region23: #{tpu_custom_call.1} parent=11 // pred_region
          _
        $region24: #{tpu_custom_call.1} parent=11 // pred_fallthru
          _
        // Predicated region
        $region25: #{tpu_custom_call.1} parent=11 // pred_check
          %p662 = pneg %p562
        $region26: #{tpu_custom_call.1} parent=11 // pred_check_branch
          %664 = sbr.rel (%p662) target = $region28
        $region27: #{tpu_custom_call.1} parent=11 // pred_region
          _
        $region28: #{tpu_custom_call.1} parent=11 // pred_fallthru
          _
      $region12: #{tpu_custom_call.1} parent=5 // pred_fallthru
        _
      %p665 = scmp.lt.s32.totalorder %s41, 4
      // Predicated region
      $region29: #{tpu_custom_call.1} parent=5 // pred_check
        %p666 = pneg %p665
      $region30: #{tpu_custom_call.1} parent=5 // pred_check_branch
        %668 = sbr.rel (%p666) target = $region32
      $region31: #{tpu_custom_call.1} parent=5 // pred_region
        // Predicated region
        $region33: #{tpu_custom_call.1} parent=31 // pred_check
          %p669 = pneg %p82
        $region34: #{tpu_custom_call.1} parent=31 // pred_check_branch
          %671 = sbr.rel (%p669) target = $region36
        $region35: #{tpu_custom_call.1} parent=31 // pred_region
          %s672 = sand.u32 %s41, 1
          %s673 = scalar_lea.sflag [#allocation4], %s672
          %s674 = sand.u32 %s72, 1
          %s675 = smul.addr %s674, 4
          %s676 = scalar_lea.vmem [#allocation3], %s675
          %678 = vsyncadd %s673, 0
          %s679 = sadd.s32 %s49, %s48
          %s680 = smul.addr %s679, 4
          %s681 = scalar_lea.hbm %s0, %s680
          %s683 = sshll.u32 %s681, 4
          %s684 = int_to_ptr.hbm [resolvable:$true] %s683
          %s685 = sshll.u32 %s676, 4
          %s686 = int_to_ptr.vmem [resolvable:$true] %s685
          %688 = dma.hbm_to_vmem [thread:$0]  %s684, 64, %s686, %s673
        $region36: #{tpu_custom_call.1} parent=31 // pred_fallthru
          _
        // Predicated region
        $region37: #{tpu_custom_call.1} parent=31 // pred_check
          %p689 = pneg %p108
        $region38: #{tpu_custom_call.1} parent=31 // pred_check_branch
          %691 = sbr.rel (%p689) target = $region40
        $region39: #{tpu_custom_call.1} parent=31 // pred_region
          %s692 = sand.u32 %s41, 1
          %s693 = scalar_lea.sflag [#allocation7], %s692
          %s694 = sand.u32 %s98, 1
          %s695 = smul.addr %s694, 4
          %s696 = scalar_lea.vmem [#allocation6], %s695
          %698 = vsyncadd %s693, 0
          %s699 = smul.addr %s48, 4
          %s700 = scalar_lea.hbm %s1, %s699
          %s702 = sshll.u32 %s700, 4
          %s703 = int_to_ptr.hbm [resolvable:$true] %s702
          %s704 = sshll.u32 %s696, 4
          %s705 = int_to_ptr.vmem [resolvable:$true] %s704
          %707 = dma.hbm_to_vmem [thread:$0]  %s703, 64, %s705, %s693
        $region40: #{tpu_custom_call.1} parent=31 // pred_fallthru
          _
        // Predicated region
        $region41: #{tpu_custom_call.1} parent=31 // pred_check
          %p708 = pneg %p176
        $region42: #{tpu_custom_call.1} parent=31 // pred_check_branch
          %710 = sbr.rel (%p708) target = $region44
        $region43: #{tpu_custom_call.1} parent=31 // pred_region
          %p711 = scmp.lt.s32.totalorder %s50, 1
          %s712 = scalar_select %p711, %s50, 1
          %s713 = smul.addr %s712, 2
          %s714 = smul.addr %s713, 4
          %s715 = scalar_lea.vmem %s4, %s714
        $region44: #{tpu_custom_call.1} parent=31 // pred_fallthru
          _
        // Predicated region
        $region45: #{tpu_custom_call.1} parent=31 // pred_check
          %p716 = pneg %p202
        $region46: #{tpu_custom_call.1} parent=31 // pred_check_branch
          %718 = sbr.rel (%p716) target = $region48
        $region47: #{tpu_custom_call.1} parent=31 // pred_region
          %s719 = sand.u32 %s41, 1
          %s720 = scalar_lea.sflag [#allocation4], %s719
          %s721 = sand.u32 %s192, 1
          %s722 = scalar_lea.vmem [#allocation11], %s721
          %724 = vsyncadd %s720, 0
          %s725 = scalar_lea.hbm %s5, %s50
          %s727 = sshll.u32 %s725, 4
          %s728 = int_to_ptr.hbm [resolvable:$true] %s727
          %s729 = sshll.u32 %s722, 4
          %s730 = int_to_ptr.vmem [resolvable:$true] %s729
          %732 = dma.hbm_to_vmem [thread:$0]  %s728, 16, %s730, %s720
        $region48: #{tpu_custom_call.1} parent=31 // pred_fallthru
          _
        // Predicated region
        $region49: #{tpu_custom_call.1} parent=31 // pred_check
          %p733 = pneg %p228
        $region50: #{tpu_custom_call.1} parent=31 // pred_check_branch
          %735 = sbr.rel (%p733) target = $region52
        $region51: #{tpu_custom_call.1} parent=31 // pred_region
          %p736 = scmp.lt.s32.totalorder %s50, 1
          %s737 = scalar_select %p736, %s50, 1
          %s738 = smul.addr %s737, 2
          %s739 = smul.addr %s738, 4
          %s740 = scalar_lea.vmem %s6, %s739
        $region52: #{tpu_custom_call.1} parent=31 // pred_fallthru
          _
        // Predicated region
        $region53: #{tpu_custom_call.1} parent=31 // pred_check
          %p741 = pneg %p254
        $region54: #{tpu_custom_call.1} parent=31 // pred_check_branch
          %743 = sbr.rel (%p741) target = $region56
        $region55: #{tpu_custom_call.1} parent=31 // pred_region
          %s744 = sand.u32 %s41, 1
          %s745 = scalar_lea.sflag [#allocation7], %s744
          %s746 = sand.u32 %s244, 1
          %s747 = scalar_lea.vmem [#allocation12], %s746
          %749 = vsyncadd %s745, 0
          %s750 = scalar_lea.hbm %s7, %s50
          %s752 = sshll.u32 %s750, 4
          %s753 = int_to_ptr.hbm [resolvable:$true] %s752
          %s754 = sshll.u32 %s747, 4
          %s755 = int_to_ptr.vmem [resolvable:$true] %s754
          %757 = dma.hbm_to_vmem [thread:$0]  %s753, 16, %s755, %s745
        $region56: #{tpu_custom_call.1} parent=31 // pred_fallthru
          _
        // Predicated region
        $region57: #{tpu_custom_call.1} parent=31 // pred_check
          %p758 = pneg %p280
        $region58: #{tpu_custom_call.1} parent=31 // pred_check_branch
          %760 = sbr.rel (%p758) target = $region60
        $region59: #{tpu_custom_call.1} parent=31 // pred_region
          %p761 = scmp.lt.s32.totalorder %s50, 1
          %s762 = scalar_select %p761, %s50, 1
          %s763 = smul.addr %s762, 2
          %s764 = smul.addr %s763, 4
          %s765 = scalar_lea.vmem %s8, %s764
        $region60: #{tpu_custom_call.1} parent=31 // pred_fallthru
          _
        // Predicated region
        $region61: #{tpu_custom_call.1} parent=31 // pred_check
          %p766 = pneg %p306
        $region62: #{tpu_custom_call.1} parent=31 // pred_check_branch
          %768 = sbr.rel (%p766) target = $region64
        $region63: #{tpu_custom_call.1} parent=31 // pred_region
          %s769 = sand.u32 %s41, 1
          %s770 = scalar_lea.sflag [#allocation4], %s769
          %s771 = sand.u32 %s296, 1
          %s772 = scalar_lea.vmem [#allocation13], %s771
          %774 = vsyncadd %s770, 0
          %s775 = scalar_lea.hbm %s9, %s50
          %s777 = sshll.u32 %s775, 4
          %s778 = int_to_ptr.hbm [resolvable:$true] %s777
          %s779 = sshll.u32 %s772, 4
          %s780 = int_to_ptr.vmem [resolvable:$true] %s779
          %782 = dma.hbm_to_vmem [thread:$0]  %s778, 16, %s780, %s770
        $region64: #{tpu_custom_call.1} parent=31 // pred_fallthru
          _
        // Predicated region
        $region65: #{tpu_custom_call.1} parent=31 // pred_check
          %p783 = pneg %p332
        $region66: #{tpu_custom_call.1} parent=31 // pred_check_branch
          %785 = sbr.rel (%p783) target = $region68
        $region67: #{tpu_custom_call.1} parent=31 // pred_region
          %s786 = sand.u32 %s41, 1
          %s787 = scalar_lea.sflag [#allocation7], %s786
          %s788 = sand.u32 %s322, 1
          %s789 = scalar_lea.vmem [#allocation14], %s788
          %791 = vsyncadd %s787, 0
          %s792 = scalar_lea.hbm %s10, %s50
          %s794 = sshll.u32 %s792, 4
          %s795 = int_to_ptr.hbm [resolvable:$true] %s794
          %s796 = sshll.u32 %s789, 4
          %s797 = int_to_ptr.vmem [resolvable:$true] %s796
          %799 = dma.hbm_to_vmem [thread:$0]  %s795, 16, %s797, %s787
        $region68: #{tpu_custom_call.1} parent=31 // pred_fallthru
          _
        // Predicated region
        $region69: #{tpu_custom_call.1} parent=31 // pred_check
          %p800 = pneg %p358
        $region70: #{tpu_custom_call.1} parent=31 // pred_check_branch
          %802 = sbr.rel (%p800) target = $region72
        $region71: #{tpu_custom_call.1} parent=31 // pred_region
          %p803 = scmp.lt.s32.totalorder %s50, 1
          %s804 = scalar_select %p803, %s50, 1
          %s805 = scalar_lea.vmem %s11, %s804
        $region72: #{tpu_custom_call.1} parent=31 // pred_fallthru
          _
        // Predicated region
        $region73: #{tpu_custom_call.1} parent=31 // pred_check
          %p806 = pneg %p384
        $region74: #{tpu_custom_call.1} parent=31 // pred_check_branch
          %808 = sbr.rel (%p806) target = $region76
        $region75: #{tpu_custom_call.1} parent=31 // pred_region
          %s809 = sand.u32 %s41, 1
          %s810 = scalar_lea.sflag [#allocation4], %s809
          %s811 = sand.u32 %s374, 1
          %s812 = smul.addr %s811, 8
          %s813 = scalar_lea.vmem [#allocation15], %s812
          %815 = vsyncadd %s810, 0
          %s816 = smul.addr %s50, 2
          %s817 = smul.addr %s816, 4
          %s818 = scalar_lea.hbm %s12, %s817
          %s819 = sshll.u32 %s818, 4
          %s820 = int_to_ptr.hbm [resolvable:$true] %s819
          %s821 = sshll.u32 %s813, 4
          %s822 = int_to_ptr.vmem [resolvable:$true] %s821
          %827 = dma.hbm_to_vmem [thread:$0]  %s820, 128, %s822, %s810, 64, 64, 4
        $region76: #{tpu_custom_call.1} parent=31 // pred_fallthru
          _
        // Predicated region
        $region77: #{tpu_custom_call.1} parent=31 // pred_check
          %p828 = pneg %p410
        $region78: #{tpu_custom_call.1} parent=31 // pred_check_branch
          %830 = sbr.rel (%p828) target = $region80
        $region79: #{tpu_custom_call.1} parent=31 // pred_region
          %p831 = scmp.lt.s32.totalorder %s50, 1
          %s832 = scalar_select %p831, %s50, 1
          %s833 = scalar_lea.vmem %s13, %s832
        $region80: #{tpu_custom_call.1} parent=31 // pred_fallthru
          _
        // Predicated region
        $region81: #{tpu_custom_call.1} parent=31 // pred_check
          %p834 = pneg %p436
        $region82: #{tpu_custom_call.1} parent=31 // pred_check_branch
          %836 = sbr.rel (%p834) target = $region84
        $region83: #{tpu_custom_call.1} parent=31 // pred_region
          %p837 = scmp.lt.s32.totalorder %s50, 1
          %s838 = scalar_select %p837, %s50, 1
          %s839 = smul.addr %s838, 4
          %s840 = smul.addr %s839, 4
          %s841 = scalar_lea.vmem %s14, %s840
        $region84: #{tpu_custom_call.1} parent=31 // pred_fallthru
          _
        // Predicated region
        $region85: #{tpu_custom_call.1} parent=31 // pred_check
          %p842 = pneg %p462
        $region86: #{tpu_custom_call.1} parent=31 // pred_check_branch
          %844 = sbr.rel (%p842) target = $region88
        $region87: #{tpu_custom_call.1} parent=31 // pred_region
          %p845 = scmp.lt.s32.totalorder %s50, 1
          %s846 = scalar_select %p845, %s50, 1
          %s847 = scalar_lea.vmem %s15, %s846
        $region88: #{tpu_custom_call.1} parent=31 // pred_fallthru
          _
        // Predicated region
        $region89: #{tpu_custom_call.1} parent=31 // pred_check
          %p848 = pneg %p488
        $region90: #{tpu_custom_call.1} parent=31 // pred_check_branch
          %850 = sbr.rel (%p848) target = $region92
        $region91: #{tpu_custom_call.1} parent=31 // pred_region
          %s851 = sand.u32 %s41, 1
          %s852 = scalar_lea.sflag [#allocation7], %s851
          %s853 = sand.u32 %s478, 1
          %s854 = scalar_lea.vmem [#allocation16], %s853
          %856 = vsyncadd %s852, 0
          %s857 = scalar_lea.hbm %s16, %s50
          %s859 = sshll.u32 %s857, 4
          %s860 = int_to_ptr.hbm [resolvable:$true] %s859
          %s861 = sshll.u32 %s854, 4
          %s862 = int_to_ptr.vmem [resolvable:$true] %s861
          %864 = dma.hbm_to_vmem [thread:$0]  %s860, 16, %s862, %s852
        $region92: #{tpu_custom_call.1} parent=31 // pred_fallthru
          _
        // Predicated region
        $region93: #{tpu_custom_call.1} parent=31 // pred_check
          %p865 = pneg %p514
        $region94: #{tpu_custom_call.1} parent=31 // pred_check_branch
          %867 = sbr.rel (%p865) target = $region96
        $region95: #{tpu_custom_call.1} parent=31 // pred_region
          %p868 = scmp.lt.s32.totalorder %s50, 1
          %s869 = scalar_select %p868, %s50, 1
          %s870 = scalar_lea.vmem %s17, %s869
        $region96: #{tpu_custom_call.1} parent=31 // pred_fallthru
          _
      $region32: #{tpu_custom_call.1} parent=5 // pred_fallthru
        _
      %p871 = scmp.le.s32.totalorder 1, %s41
      %p872 = scmp.lt.s32.totalorder %s41, 5
      %p873 = pnand %p871, %p872
      %p874 = pneg %p873
      // Predicated region
      $region97: #{tpu_custom_call.1} parent=5 // pred_check
        _
      $region98: #{tpu_custom_call.1} parent=5 // pred_check_branch
        %876 = sbr.rel (%p873) target = $region100
      $region99: #{tpu_custom_call.1} parent=5 // pred_region
        %s877 = ssub.s32 %s41, 1
        %s878 = sand.u32 %s46, 1
        %s879 = scalar_lea.sflag [#allocation4], %s878
        %s880 = sand.u32 %s75, 1
        %s881 = smul.addr %s880, 4
        %s882 = scalar_lea.vmem [#allocation3], %s881
        // Predicated region
        $region101: #{tpu_custom_call.1} parent=99 // pred_check
          %p883 = pneg %p88
        $region102: #{tpu_custom_call.1} parent=99 // pred_check_branch
          %885 = sbr.rel (%p883) target = $region104
        $region103: #{tpu_custom_call.1} parent=99 // pred_region
          %887 = dma.done %s879, 64
        $region104: #{tpu_custom_call.1} parent=99 // pred_fallthru
          _
        %s888 = sand.u32 %s46, 1
        %s889 = scalar_lea.sflag [#allocation7], %s888
        %s890 = sand.u32 %s101, 1
        %s891 = smul.addr %s890, 4
        %s892 = scalar_lea.vmem [#allocation6], %s891
        // Predicated region
        $region105: #{tpu_custom_call.1} parent=99 // pred_check
          %p893 = pneg %p114
        $region106: #{tpu_custom_call.1} parent=99 // pred_check_branch
          %895 = sbr.rel (%p893) target = $region108
        $region107: #{tpu_custom_call.1} parent=99 // pred_region
          %897 = dma.done %s889, 64
        $region108: #{tpu_custom_call.1} parent=99 // pred_fallthru
          _
        // Predicated region
        $region109: #{tpu_custom_call.1} parent=99 // pred_check
          %p898 = pneg %p135
        $region110: #{tpu_custom_call.1} parent=99 // pred_check_branch
          %900 = sbr.rel (%p898) target = $region112
        $region111: #{tpu_custom_call.1} parent=99 // pred_region
          %902 = dma.done [#allocation7], 64
        $region112: #{tpu_custom_call.1} parent=99 // pred_fallthru
          _
        // Predicated region
        $region113: #{tpu_custom_call.1} parent=99 // pred_check
          %p903 = pneg %p156
        $region114: #{tpu_custom_call.1} parent=99 // pred_check_branch
          %905 = sbr.rel (%p903) target = $region116
        $region115: #{tpu_custom_call.1} parent=99 // pred_region
          %907 = dma.done [#allocation10], 16
        $region116: #{tpu_custom_call.1} parent=99 // pred_fallthru
          _
        %s908 = sand.u32 %s46, 1
        %s909 = scalar_lea.sflag [#allocation4], %s908
        %s910 = sand.u32 %s195, 1
        %s911 = scalar_lea.vmem [#allocation11], %s910
        // Predicated region
        $region117: #{tpu_custom_call.1} parent=99 // pred_check
          %p912 = pneg %p208
        $region118: #{tpu_custom_call.1} parent=99 // pred_check_branch
          %914 = sbr.rel (%p912) target = $region120
        $region119: #{tpu_custom_call.1} parent=99 // pred_region
          %916 = dma.done %s909, 16
        $region120: #{tpu_custom_call.1} parent=99 // pred_fallthru
          _
        %s917 = sand.u32 %s46, 1
        %s918 = scalar_lea.sflag [#allocation7], %s917
        %s919 = sand.u32 %s247, 1
        %s920 = scalar_lea.vmem [#allocation12], %s919
        // Predicated region
        $region121: #{tpu_custom_call.1} parent=99 // pred_check
          %p921 = pneg %p260
        $region122: #{tpu_custom_call.1} parent=99 // pred_check_branch
          %923 = sbr.rel (%p921) target = $region124
        $region123: #{tpu_custom_call.1} parent=99 // pred_region
          %925 = dma.done %s918, 16
        $region124: #{tpu_custom_call.1} parent=99 // pred_fallthru
          _
        %s926 = sand.u32 %s46, 1
        %s927 = scalar_lea.sflag [#allocation4], %s926
        %s928 = sand.u32 %s299, 1
        %s929 = scalar_lea.vmem [#allocation13], %s928
        // Predicated region
        $region125: #{tpu_custom_call.1} parent=99 // pred_check
          %p930 = pneg %p312
        $region126: #{tpu_custom_call.1} parent=99 // pred_check_branch
          %932 = sbr.rel (%p930) target = $region128
        $region127: #{tpu_custom_call.1} parent=99 // pred_region
          %934 = dma.done %s927, 16
        $region128: #{tpu_custom_call.1} parent=99 // pred_fallthru
          _
        %s935 = sand.u32 %s46, 1
        %s936 = scalar_lea.sflag [#allocation7], %s935
        %s937 = sand.u32 %s325, 1
        %s938 = scalar_lea.vmem [#allocation14], %s937
        // Predicated region
        $region129: #{tpu_custom_call.1} parent=99 // pred_check
          %p939 = pneg %p338
        $region130: #{tpu_custom_call.1} parent=99 // pred_check_branch
          %941 = sbr.rel (%p939) target = $region132
        $region131: #{tpu_custom_call.1} parent=99 // pred_region
          %943 = dma.done %s936, 16
        $region132: #{tpu_custom_call.1} parent=99 // pred_fallthru
          _
        %s944 = sand.u32 %s46, 1
        %s945 = scalar_lea.sflag [#allocation4], %s944
        %s946 = sand.u32 %s377, 1
        %s947 = smul.addr %s946, 8
        %s948 = scalar_lea.vmem [#allocation15], %s947
        // Predicated region
        $region133: #{tpu_custom_call.1} parent=99 // pred_check
          %p949 = pneg %p390
        $region134: #{tpu_custom_call.1} parent=99 // pred_check_branch
          %951 = sbr.rel (%p949) target = $region136
        $region135: #{tpu_custom_call.1} parent=99 // pred_region
          %953 = dma.done %s945, 128
        $region136: #{tpu_custom_call.1} parent=99 // pred_fallthru
          _
        %s954 = sand.u32 %s46, 1
        %s955 = scalar_lea.sflag [#allocation7], %s954
        %s956 = sand.u32 %s481, 1
        %s957 = scalar_lea.vmem [#allocation16], %s956
        // Predicated region
        $region137: #{tpu_custom_call.1} parent=99 // pred_check
          %p958 = pneg %p494
        $region138: #{tpu_custom_call.1} parent=99 // pred_check_branch
          %960 = sbr.rel (%p958) target = $region140
        $region139: #{tpu_custom_call.1} parent=99 // pred_region
          %962 = dma.done %s955, 16
        $region140: #{tpu_custom_call.1} parent=99 // pred_fallthru
          _
        %s963 = sand.u32 %s46, 1
        %s964 = scalar_lea.sflag [#allocation4], %s963
        %s965 = sand.u32 %s75, 1
        %s966 = smul.addr %s965, 4
        %s967 = scalar_lea.vmem [#allocation3], %s966
        %p968 = pneg %p88
        %p969 = pneg %p85
        %s970 = sand.u32 %s46, 1
        %s971 = scalar_lea.sflag [#allocation7], %s970
        %s972 = sand.u32 %s101, 1
        %s973 = smul.addr %s972, 4
        %s974 = scalar_lea.vmem [#allocation6], %s973
        %p975 = pneg %p114
        %p976 = pneg %p111
        %p977 = pneg %p135
        %p978 = pneg %p132
        %p979 = pneg %p156
        %p980 = pneg %p153
        %p981 = scmp.lt.s32.totalorder %s53, 1
        %s982 = scalar_select %p981, %s53, 1
        %s983 = smul.addr %s982, 2
        %s984 = smul.addr %s983, 4
        %s985 = scalar_lea.vmem %s4, %s984
        %p986 = pneg %p182
        %p987 = pneg %p179
        %s988 = sand.u32 %s46, 1
        %s989 = scalar_lea.sflag [#allocation4], %s988
        %s990 = sand.u32 %s195, 1
        %s991 = scalar_lea.vmem [#allocation11], %s990
        %p992 = pneg %p208
        %p993 = pneg %p205
        %p994 = scmp.lt.s32.totalorder %s53, 1
        %s995 = scalar_select %p994, %s53, 1
        %s996 = smul.addr %s995, 2
        %s997 = smul.addr %s996, 4
        %s998 = scalar_lea.vmem %s6, %s997
        %p999 = pneg %p234
        %p1000 = pneg %p231
        %s1001 = sand.u32 %s46, 1
        %s1002 = scalar_lea.sflag [#allocation7], %s1001
        %s1003 = sand.u32 %s247, 1
        %s1004 = scalar_lea.vmem [#allocation12], %s1003
        %p1005 = pneg %p260
        %p1006 = pneg %p257
        %p1007 = scmp.lt.s32.totalorder %s53, 1
        %s1008 = scalar_select %p1007, %s53, 1
        %s1009 = smul.addr %s1008, 2
        %s1010 = smul.addr %s1009, 4
        %s1011 = scalar_lea.vmem %s8, %s1010
        %p1012 = pneg %p286
        %p1013 = pneg %p283
        %s1014 = sand.u32 %s46, 1
        %s1015 = scalar_lea.sflag [#allocation4], %s1014
        %s1016 = sand.u32 %s299, 1
        %s1017 = scalar_lea.vmem [#allocation13], %s1016
        %p1018 = pneg %p312
        %p1019 = pneg %p309
        %s1020 = sand.u32 %s46, 1
        %s1021 = scalar_lea.sflag [#allocation7], %s1020
        %s1022 = sand.u32 %s325, 1
        %s1023 = scalar_lea.vmem [#allocation14], %s1022
        %p1024 = pneg %p338
        %p1025 = pneg %p335
        %p1026 = scmp.lt.s32.totalorder %s53, 1
        %s1027 = scalar_select %p1026, %s53, 1
        %s1028 = scalar_lea.vmem %s11, %s1027
        %p1029 = pneg %p364
        %p1030 = pneg %p361
        %s1031 = sand.u32 %s46, 1
        %s1032 = scalar_lea.sflag [#allocation4], %s1031
        %s1033 = sand.u32 %s377, 1
        %s1034 = smul.addr %s1033, 8
        %s1035 = scalar_lea.vmem [#allocation15], %s1034
        %p1036 = pneg %p390
        %p1037 = pneg %p387
        %p1038 = scmp.lt.s32.totalorder %s53, 1
        %s1039 = scalar_select %p1038, %s53, 1
        %s1040 = scalar_lea.vmem %s13, %s1039
        %p1041 = pneg %p416
        %p1042 = pneg %p413
        %p1043 = scmp.lt.s32.totalorder %s53, 1
        %s1044 = scalar_select %p1043, %s53, 1
        %s1045 = smul.addr %s1044, 4
        %s1046 = smul.addr %s1045, 4
        %s1047 = scalar_lea.vmem %s14, %s1046
        %p1048 = pneg %p442
        %p1049 = pneg %p439
        %p1050 = scmp.lt.s32.totalorder %s53, 1
        %s1051 = scalar_select %p1050, %s53, 1
        %s1052 = scalar_lea.vmem %s15, %s1051
        %p1053 = pneg %p468
        %p1054 = pneg %p465
        %s1055 = sand.u32 %s46, 1
        %s1056 = scalar_lea.sflag [#allocation7], %s1055
        %s1057 = sand.u32 %s481, 1
        %s1058 = scalar_lea.vmem [#allocation16], %s1057
        %p1059 = pneg %p494
        %p1060 = pneg %p491
        %p1061 = scmp.lt.s32.totalorder %s53, 1
        %s1062 = scalar_select %p1061, %s53, 1
        %s1063 = scalar_lea.vmem %s17, %s1062
        %p1064 = pneg %p520
        %p1065 = pneg %p517
        %p1066 = pneg %p541
        %p1067 = pneg %p538
        %p1068 = pneg %p562
        %p1069 = pneg %p559
        %p1070 = pneg %p590
        %p1071 = pneg %p587
        %s1072 = sand.u32 %s577, 1
        %s1073 = scalar_lea.sflag [#allocation5], %s1072
        %s1074 = sand.u32 %s577, 1
        %s1075 = smul.addr %s1074, 8
        %s1076 = scalar_lea.vmem [#allocation17], %s1075
        %p1077 = pneg %p620
        %p1078 = pneg %p617
        %s1079 = sand.u32 %s607, 1
        %s1080 = scalar_lea.sflag [#allocation19], %s1079
        %s1081 = sand.u32 %s607, 1
        %s1082 = smul.addr %s1081, 16
        %s1083 = scalar_lea.vmem [#allocation18], %s1082
        %p1084 = scmp.lt.s32.totalorder %s53, 1
        %s1085 = scalar_select %p1084, %s53, 1
        %s1086 = smul.addr %s1085, 2
        %s1087 = smul.addr %s1086, 4
        %s1088 = scalar_lea.vmem %s4, %s1087
        %p1089 = scmp.lt.s32.totalorder %s53, 1
        %s1090 = scalar_select %p1089, %s53, 1
        %s1091 = smul.addr %s1090, 2
        %s1092 = smul.addr %s1091, 4
        %s1093 = scalar_lea.vmem %s6, %s1092
        %p1094 = scmp.lt.s32.totalorder %s53, 1
        %s1095 = scalar_select %p1094, %s53, 1
        %s1096 = smul.addr %s1095, 2
        %s1097 = smul.addr %s1096, 4
        %s1098 = scalar_lea.vmem %s8, %s1097
        %p1099 = scmp.lt.s32.totalorder %s53, 1
        %s1100 = scalar_select %p1099, %s53, 1
        %s1101 = scalar_lea.vmem %s11, %s1100
        %p1102 = scmp.lt.s32.totalorder %s53, 1
        %s1103 = scalar_select %p1102, %s53, 1
        %s1104 = scalar_lea.vmem %s13, %s1103
        %p1105 = scmp.lt.s32.totalorder %s53, 1
        %s1106 = scalar_select %p1105, %s53, 1
        %s1107 = smul.addr %s1106, 4
        %s1108 = smul.addr %s1107, 4
        %s1109 = scalar_lea.vmem %s14, %s1108
        %p1110 = scmp.lt.s32.totalorder %s53, 1
        %s1111 = scalar_select %p1110, %s53, 1
        %s1112 = scalar_lea.vmem %s15, %s1111
        %p1113 = scmp.lt.s32.totalorder %s53, 1
        %s1114 = scalar_select %p1113, %s53, 1
        %s1115 = scalar_lea.vmem %s17, %s1114
        %p1117 = scmp.eq.s32.totalorder %s53, 0
        // Predicated region
        $region141: #{tpu_custom_call.1} parent=99 // pred_check
          %p1118 = pneg %p1117
        $region142: #{tpu_custom_call.1} parent=99 // pred_check_branch
          %1120 = sbr.rel (%p1118) target = $region144
        $region143: #{tpu_custom_call.1} parent=99 // pred_region
          %v1121 = vld [vmem:[%s882] sm:$0xf]
          %v1122 = vld [vmem:[#allocation8] sm:$0xf]
          %v1123 = vld [vmem:[#allocation9] sm:$0x1]
          %v1125 = vperm.slane %v1123, 0
          %vm1127 = vcmask 64512
          %v1129 = vsel %vm1127, %v1121, 0
          %vm1131 = vcmask 1043456
          %v1133 = vsel %vm1131, %v1122, 0
          %1135 = vmatpush.bf16.msra.mxu0 0
          %1136 = vmatpush.bf16.msra.mxu0 0
          %1137 = vmatpush.bf16.msra.mxu0 0
          %1138 = vmatpush.bf16.msra.mxu0 0
          %1139 = vmatpush.bf16.msra.mxu0 0
          %1140 = vmatpush.bf16.msra.mxu0 0
          %1141 = vmatpush.bf16.msra.mxu0 0
          %1142 = vmatpush.bf16.msra.mxu0 %v1133
          %1143 = vmatmul.bf16.gmra.mxu0 %v1129
          %v1144 = vpop.f32.mrf.mxu0
          %v1145 = vadd.f32 %v1125, %v1144
          %v1146 = vpop.f32.mrf.mxu0
          %1147 = vdwg.mxu0
          %vm1148 = vcmask 130048
          %1149 = vst.msk [vmem:[#allocation2] sm:$0xff] %vm1148, %v1145
        $region144: #{tpu_custom_call.1} parent=99 // pred_fallthru
          _
        %v1150 = vld [vmem:[#allocation2] sm:$0xff]
        %v1151 = vld [vmem:[%s892] sm:$0xf]
        %v1152 = vld [vmem:[%s1088] sm:$0xf]
        %v1153 = vld [vmem:[%s1088 + $0x4] sm:$0xf]
        %v1154 = vpack.c.bf16 %v1150, %v1150
        %v1155 = vld [vmem:[%s911] sm:$0x1]
        %v1157 = vperm.slane %v1155, 0
        %v1161 = vunpack.c.l.b16 %v1152
        %v1162 = vunpack.c.l.b16 %v1153
        %v1163 = vpack.c.b16 %v1162, %v1161
        %vm1165 = vcmask 130048
        %v1167 = vsel %vm1165, %v1154, 0
        %1169 = vmatpush.bf16.msra.mxu0 0
        %1170 = vmatpush.bf16.msra.mxu0 0
        %1171 = vmatpush.bf16.msra.mxu0 0
        %1172 = vmatpush.bf16.msra.mxu0 0
        %1173 = vmatpush.bf16.msra.mxu0 0
        %1174 = vmatpush.bf16.msra.mxu0 0
        %1175 = vmatpush.bf16.msra.mxu0 0
        %1176 = vmatpush.bf16.msra.mxu0 %v1163
        %1177 = vmatmul.bf16.gmra.mxu0 %v1167
        %v1178 = vpop.f32.mrf.mxu0
        %v1179 = vadd.f32 %v1157, %v1178
        %v1180 = vpop.f32.mrf.mxu0
        %1181 = vdwg.mxu0
        %v1182 = vld [vmem:[%s1093] sm:$0xf]
        %v1183 = vld [vmem:[%s1093 + $0x4] sm:$0xf]
        %v1184 = vld [vmem:[%s920] sm:$0x1]
        %v1186 = vperm.slane %v1184, 0
        %v1190 = vunpack.c.l.b16 %v1182
        %v1191 = vunpack.c.l.b16 %v1183
        %v1192 = vpack.c.b16 %v1191, %v1190
        %v1195 = vsel %vm1165, %v1151, 0
        %1197 = vmatpush.bf16.msra.mxu0 0
        %1198 = vmatpush.bf16.msra.mxu0 0
        %1199 = vmatpush.bf16.msra.mxu0 0
        %1200 = vmatpush.bf16.msra.mxu0 0
        %1201 = vmatpush.bf16.msra.mxu0 0
        %1202 = vmatpush.bf16.msra.mxu0 0
        %1203 = vmatpush.bf16.msra.mxu0 0
        %1204 = vmatpush.bf16.msra.mxu0 %v1192
        %1205 = vmatmul.bf16.gmra.mxu0 %v1195
        %v1206 = vpop.f32.mrf.mxu0
        %v1207 = vadd.f32 %v1186, %v1206
        %v1208 = vpop.f32.mrf.mxu0
        %1209 = vdwg.mxu0
        %v1210 = vpack.c.bf16 %v1179, %v1179
        %v1211 = vpack.c.bf16 %v1207, %v1207
        %vm1212 = vcmask 64512
        %v1214 = vsel %vm1212, %v1210, 0
        %v1217 = vsel %vm1212, %v1211, 0
        %1219 = vmatpush.bf16.xpose.msra.mxu0 0
        %1220 = vmatpush.bf16.xpose.msra.mxu0 0
        %1221 = vmatpush.bf16.xpose.msra.mxu0 0
        %1222 = vmatpush.bf16.xpose.msra.mxu0 0
        %1223 = vmatpush.bf16.xpose.msra.mxu0 0
        %1224 = vmatpush.bf16.xpose.msra.mxu0 0
        %1225 = vmatpush.bf16.xpose.msra.mxu0 0
        %1226 = vmatpush.bf16.xpose.msra.mxu0 %v1217
        %1227 = vmatmul.bf16.gmra.mxu0 %v1214
        %v1228 = vpop.f32.mrf.mxu0
        %v1229 = vadd.f32 0.0, %v1228
        %v1230 = vpop.f32.mrf.mxu0
        %1231 = vdwg.mxu0
        %v1232 = vsel %vm1212, %v1229, -inf
        %1233 = vmax.xlane.f32.xlu0 %v1232
        %v1234 = vpop.xlane.xlu0 %1233
        %v1235 = vsub.f32 %v1229, %v1234
        %v1236 = vmul.f32 %v1235, 1.442695
        %v1237 = vpow.pop %v1236
        %v1238 = vsel %vm1212, %v1237, 0.0
        %1239 = vadd.xlane.f32.xlu0 %v1238
        %v1240 = vpop.xlane.xlu0 %1239
        %v1241 = vrcp.pop %v1240
        %v1242 = vmul.f32 %v1240, %v1241
        %v1243 = vsub.f32 1.0, %v1242
        %v1244 = vmul.f32 %v1241, %v1243
        %v1245 = vadd.f32 %v1241, %v1244
        %vm1246 = vweird.f32 %v1240
        %vm1247 = vweird.f32 %v1241
        %vm1248 = vmor %vm1246, %vm1247
        %v1249 = vsel %vm1248, %v1241, %v1245
        %v1250 = vand.u32 2147483647, %v1240
        %vm1251 = vcmp.eq.f32.partialorder %v1250, 8.507059e+37
        %v1252 = vand.u32 %v1240, 2147483648
        %v1253 = vor.u32 1.1754944e-38, %v1252
        %v1254 = vsel %vm1251, %v1253, %v1249
        %v1255 = vmul.f32 %v1237, %v1254
        %1256 = vst.msk [vmem:[%s1083] sm:$0xff] %vm1212, %v1255
        %v1257 = vpack.c.bf16 %v1255, %v1255
        %1259 = vrot.lane.b32.xlu0 %v1211, 112
        %v1260 = vpop.permute.xlu0 %1259
        %v1262 = vsel %vm1212, %v1257, 0
        %vm1264 = vcmask 1043456
        %v1266 = vsel %vm1264, %v1260, 0
        %1268 = vmatpush.bf16.msra.mxu0 0
        %1269 = vmatpush.bf16.msra.mxu0 0
        %1270 = vmatpush.bf16.msra.mxu0 0
        %1271 = vmatpush.bf16.msra.mxu0 0
        %1272 = vmatpush.bf16.msra.mxu0 0
        %1273 = vmatpush.bf16.msra.mxu0 0
        %1274 = vmatpush.bf16.msra.mxu0 0
        %1275 = vmatpush.bf16.msra.mxu0 %v1266
        %1276 = vmatmul.bf16.gmra.mxu0 %v1262
        %v1277 = vpop.f32.mrf.mxu0
        %v1278 = vadd.f32 0.0, %v1277
        %v1279 = vpop.f32.mrf.mxu0
        %1280 = vdwg.mxu0
        %1282 = vrot.lane.b32.xlu0 %v1210, 120
        %v1283 = vpop.permute.xlu0 %1282
        %1284 = vrot.lane.b32.xlu0 %v1211, 120
        %v1285 = vpop.permute.xlu0 %1284
        %v1287 = vsel %vm1212, %v1283, 0
        %v1290 = vsel %vm1212, %v1285, 0
        %1292 = vmatpush.bf16.xpose.msra.mxu0 0
        %1293 = vmatpush.bf16.xpose.msra.mxu0 0
        %1294 = vmatpush.bf16.xpose.msra.mxu0 0
        %1295 = vmatpush.bf16.xpose.msra.mxu0 0
        %1296 = vmatpush.bf16.xpose.msra.mxu0 0
        %1297 = vmatpush.bf16.xpose.msra.mxu0 0
        %1298 = vmatpush.bf16.xpose.msra.mxu0 0
        %1299 = vmatpush.bf16.xpose.msra.mxu0 %v1290
        %1300 = vmatmul.bf16.gmra.mxu0 %v1287
        %v1301 = vpop.f32.mrf.mxu0
        %v1302 = vadd.f32 0.0, %v1301
        %v1303 = vpop.f32.mrf.mxu0
        %1304 = vdwg.mxu0
        %v1305 = vsel %vm1212, %v1302, -inf
        %1306 = vmax.xlane.f32.xlu0 %v1305
        %v1307 = vpop.xlane.xlu0 %1306
        %v1308 = vsub.f32 %v1302, %v1307
        %v1309 = vmul.f32 %v1308, 1.442695
        %v1310 = vpow.pop %v1309
        %v1311 = vsel %vm1212, %v1310, 0.0
        %1312 = vadd.xlane.f32.xlu0 %v1311
        %v1313 = vpop.xlane.xlu0 %1312
        %v1314 = vrcp.pop %v1313
        %v1315 = vmul.f32 %v1313, %v1314
        %v1316 = vsub.f32 1.0, %v1315
        %v1317 = vmul.f32 %v1314, %v1316
        %v1318 = vadd.f32 %v1314, %v1317
        %vm1319 = vweird.f32 %v1313
        %vm1320 = vweird.f32 %v1314
        %vm1321 = vmor %vm1319, %vm1320
        %v1322 = vsel %vm1321, %v1314, %v1318
        %v1323 = vand.u32 2147483647, %v1313
        %vm1324 = vcmp.eq.f32.partialorder %v1323, 8.507059e+37
        %v1325 = vand.u32 %v1313, 2147483648
        %v1326 = vor.u32 1.1754944e-38, %v1325
        %v1327 = vsel %vm1324, %v1326, %v1322
        %v1328 = vmul.f32 %v1310, %v1327
        %s1329 = scalar_lea.vmem %s1083, 8 [#allocation18]
        %1330 = vst.msk [vmem:[%s1329] sm:$0xff] %vm1212, %v1328
        %v1331 = vpack.c.bf16 %v1328, %v1328
        %1332 = vrot.lane.b32.xlu0 %v1211, 104
        %v1333 = vpop.permute.xlu0 %1332
        %v1335 = vsel %vm1212, %v1331, 0
        %v1338 = vsel %vm1264, %v1333, 0
        %1340 = vmatpush.bf16.msra.mxu0 0
        %1341 = vmatpush.bf16.msra.mxu0 0
        %1342 = vmatpush.bf16.msra.mxu0 0
        %1343 = vmatpush.bf16.msra.mxu0 0
        %1344 = vmatpush.bf16.msra.mxu0 0
        %1345 = vmatpush.bf16.msra.mxu0 0
        %1346 = vmatpush.bf16.msra.mxu0 0
        %1347 = vmatpush.bf16.msra.mxu0 %v1338
        %1348 = vmatmul.bf16.gmra.mxu0 %v1335
        %v1349 = vpop.f32.mrf.mxu0
        %v1350 = vadd.f32 0.0, %v1349
        %v1351 = vpop.f32.mrf.mxu0
        %1352 = vdwg.mxu0
        %1354 = vrot.lane.b32.xlu0 %v1350, 8
        %v1355 = vpop.permute.xlu0 %1354
        %v1357 = vsel %vm1212, %v1278, %v1355
        %v1358 = vld [vmem:[%s1098] sm:$0xf]
        %v1359 = vld [vmem:[%s1098 + $0x4] sm:$0xf]
        %v1360 = vpack.c.bf16 %v1357, %v1357
        %v1361 = vld [vmem:[%s929] sm:$0x1]
        %v1363 = vperm.slane %v1361, 0
        %v1367 = vunpack.c.l.b16 %v1358
        %v1368 = vunpack.c.l.b16 %v1359
        %v1369 = vpack.c.b16 %v1368, %v1367
        %v1372 = vsel %vm1165, %v1360, 0
        %1374 = vmatpush.bf16.msra.mxu0 0
        %1375 = vmatpush.bf16.msra.mxu0 0
        %1376 = vmatpush.bf16.msra.mxu0 0
        %1377 = vmatpush.bf16.msra.mxu0 0
        %1378 = vmatpush.bf16.msra.mxu0 0
        %1379 = vmatpush.bf16.msra.mxu0 0
        %1380 = vmatpush.bf16.msra.mxu0 0
        %1381 = vmatpush.bf16.msra.mxu0 %v1369
        %1382 = vmatmul.bf16.gmra.mxu0 %v1372
        %v1383 = vpop.f32.mrf.mxu0
        %v1384 = vadd.f32 %v1363, %v1383
        %v1385 = vpop.f32.mrf.mxu0
        %1386 = vdwg.mxu0
        %v1387 = vadd.f32 %v1150, %v1384
        %v1388 = vld [vmem:[%s938] sm:$0x1]
        %v1389 = vld [vmem:[%s1101] sm:$0x1]
        %v1390 = vsel %vm1165, %v1387, 0.0
        %1391 = vadd.xlane.f32.xlu0 %v1390
        %v1392 = vpop.xlane.xlu0 %1391
        %v1393 = vrcp.pop 16.0
        %v1394 = vmul.f32 16.0, %v1393
        %v1395 = vsub.f32 1.0, %v1394
        %v1396 = vmul.f32 %v1393, %v1395
        %v1397 = vadd.f32 %v1393, %v1396
        %vm1398 = vweird.f32 %v1393
        %v1399 = vsel %vm1398, %v1393, %v1397
        %v1400 = vmul.f32 %v1392, %v1399
        %v1401 = vsub.f32 %v1387, %v1400
        %v1402 = vmul.f32 %v1401, %v1401
        %v1403 = vsel %vm1165, %v1402, 0.0
        %1404 = vadd.xlane.f32.xlu0 %v1403
        %v1405 = vpop.xlane.xlu0 %1404
        %v1406 = vmul.f32 %v1405, %v1399
        %v1407 = vadd.f32 %v1406, 1e-05
        %v1408 = vrsqrt.pop %v1407
        %v1409 = vmul.f32 %v1408, %v1407
        %v1410 = vmul.f32 %v1409, %v1408
        %v1411 = vmul.f32 0.5, %v1410
        %v1412 = vsub.f32 1.5, %v1411
        %v1413 = vmul.f32 %v1408, %v1412
        %vm1414 = vweird.f32 %v1407
        %vm1415 = vweird.f32 %v1408
        %vm1416 = vmor %vm1414, %vm1415
        %v1417 = vsel %vm1416, %v1408, %v1413
        %v1418 = vmul.f32 %v1401, %v1417
        %v1420 = vperm.slane %v1388, 0
        %v1422 = vmul.f32 %v1418, %v1420
        %v1424 = vperm.slane %v1389, 0
        %v1426 = vadd.f32 %v1422, %v1424
        %v1427 = vld [vmem:[%s948] sm:$0xf]
        %v1428 = vld [vmem:[%s948 + $0x4] sm:$0xf]
        %v1429 = vpack.c.bf16 %v1426, %v1426
        %v1430 = vld [vmem:[%s1104] sm:$0x1]
        %v1432 = vperm.slane %v1430, 0
        %v1436 = vunpack.c.l.b16 %v1427
        %v1437 = vunpack.c.l.b16 %v1428
        %v1438 = vpack.c.b16 %v1437, %v1436
        %v1441 = vsel %vm1165, %v1429, 0
        %1443 = vmatpush.bf16.msra.mxu0 0
        %1444 = vmatpush.bf16.msra.mxu0 0
        %1445 = vmatpush.bf16.msra.mxu0 0
        %1446 = vmatpush.bf16.msra.mxu0 0
        %1447 = vmatpush.bf16.msra.mxu0 0
        %1448 = vmatpush.bf16.msra.mxu0 0
        %1449 = vmatpush.bf16.msra.mxu0 0
        %1450 = vmatpush.bf16.msra.mxu0 %v1438
        %1451 = vmatmul.bf16.gmra.mxu0 %v1441
        %v1452 = vpop.f32.mrf.mxu0
        %v1453 = vadd.f32 %v1432, %v1452
        %v1454 = vpop.f32.mrf.mxu0
        %1455 = vdwg.mxu0
        %v1456 = vmax.f32 %v1453, 0.0
        %v1457 = vld [vmem:[%s1109] sm:$0xf]
        %v1458 = vld [vmem:[%s1109 + $0x4] sm:$0xf]
        %v1459 = vld [vmem:[%s1109 + $0x8] sm:$0xf]
        %v1460 = vld [vmem:[%s1109 + $0xc] sm:$0xf]
        %v1461 = vpack.c.bf16 %v1456, %v1456
        %v1462 = vld [vmem:[%s1112] sm:$0x1]
        %v1464 = vperm.slane %v1462, 0
        %v1470 = vunpack.c.l.b16 %v1457
        %v1471 = vunpack.c.l.b16 %v1458
        %v1472 = vunpack.c.l.b16 %v1459
        %v1473 = vunpack.c.l.b16 %v1460
        %v1474 = vpack.c.b16 %v1471, %v1470
        %v1475 = vpack.c.b16 %v1473, %v1472
        %vm1478 = vcmask 261120
        %v1480 = vsel %vm1478, %v1461, 0
        %1482 = vmatpush.bf16.msra.mxu0 0
        %1483 = vmatpush.bf16.msra.mxu0 0
        %1484 = vmatpush.bf16.msra.mxu0 0
        %1485 = vmatpush.bf16.msra.mxu0 0
        %1486 = vmatpush.bf16.msra.mxu0 0
        %1487 = vmatpush.bf16.msra.mxu0 0
        %1488 = vmatpush.bf16.msra.mxu0 %v1475
        %1489 = vmatpush.bf16.msra.mxu0 %v1474
        %1490 = vmatmul.bf16.gmra.mxu0 %v1480
        %v1491 = vpop.f32.mrf.mxu0
        %v1492 = vadd.f32 %v1464, %v1491
        %v1493 = vpop.f32.mrf.mxu0
        %1494 = vdwg.mxu0
        %v1495 = vadd.f32 %v1426, %v1492
        %v1496 = vld [vmem:[%s957] sm:$0x1]
        %v1497 = vld [vmem:[%s1115] sm:$0x1]
        %v1498 = vsel %vm1165, %v1495, 0.0
        %1499 = vadd.xlane.f32.xlu0 %v1498
        %v1500 = vpop.xlane.xlu0 %1499
        %v1501 = vmul.f32 %v1500, %v1399
        %v1502 = vsub.f32 %v1495, %v1501
        %v1503 = vmul.f32 %v1502, %v1502
        %v1504 = vsel %vm1165, %v1503, 0.0
        %1505 = vadd.xlane.f32.xlu0 %v1504
        %v1506 = vpop.xlane.xlu0 %1505
        %v1507 = vmul.f32 %v1506, %v1399
        %v1508 = vadd.f32 %v1507, 1e-05
        %v1509 = vrsqrt.pop %v1508
        %v1510 = vmul.f32 %v1509, %v1508
        %v1511 = vmul.f32 %v1510, %v1509
        %v1512 = vmul.f32 0.5, %v1511
        %v1513 = vsub.f32 1.5, %v1512
        %v1514 = vmul.f32 %v1509, %v1513
        %vm1515 = vweird.f32 %v1508
        %vm1516 = vweird.f32 %v1509
        %vm1517 = vmor %vm1515, %vm1516
        %v1518 = vsel %vm1517, %v1509, %v1514
        %v1519 = vmul.f32 %v1502, %v1518
        %v1521 = vperm.slane %v1496, 0
        %v1523 = vmul.f32 %v1519, %v1521
        %v1525 = vperm.slane %v1497, 0
        %v1527 = vadd.f32 %v1523, %v1525
        %1528 = vst.msk [vmem:[#allocation2] sm:$0xff] %vm1165, %v1527
        %p1529 = scmp.eq.s32.totalorder %s53, 1
        // Predicated region
        $region145: #{tpu_custom_call.1} parent=99 // pred_check
          %p1530 = pneg %p1529
        $region146: #{tpu_custom_call.1} parent=99 // pred_check_branch
          %1532 = sbr.rel (%p1530) target = $region148
        $region147: #{tpu_custom_call.1} parent=99 // pred_region
          %v1533 = vld [vmem:[%s18] sm:$0xf]
          %v1534 = vld [vmem:[%s18 + $0x4] sm:$0xf]
          %v1535 = vpack.c.bf16 %v1527, %v1527
          %v1536 = vld [vmem:[%s19] sm:$0x1]
          %v1538 = vperm.slane %v1536, 0
          %v1542 = vunpack.c.l.b16 %v1533
          %v1543 = vunpack.c.l.b16 %v1534
          %v1544 = vpack.c.b16 %v1543, %v1542
          %v1547 = vsel %vm1165, %v1535, 0
          %1549 = vmatpush.bf16.msra.mxu0 0
          %1550 = vmatpush.bf16.msra.mxu0 0
          %1551 = vmatpush.bf16.msra.mxu0 0
          %1552 = vmatpush.bf16.msra.mxu0 0
          %1553 = vmatpush.bf16.msra.mxu0 0
          %1554 = vmatpush.bf16.msra.mxu0 0
          %1555 = vmatpush.bf16.msra.mxu0 0
          %1556 = vmatpush.bf16.msra.mxu0 %v1544
          %1557 = vmatmul.bf16.gmra.mxu0 %v1547
          %v1558 = vpop.f32.mrf.mxu0
          %v1559 = vadd.f32 %v1538, %v1558
          %v1560 = vpop.f32.mrf.mxu0
          %1561 = vdwg.mxu0
          %1562 = vst [vmem:[%s1076] sm:$0xff] %v1559
        $region148: #{tpu_custom_call.1} parent=99 // pred_fallthru
          _
        %s1563 = sand.u32 %s577, 1
        %s1564 = scalar_lea.sflag [#allocation5], %s1563
        %s1565 = sand.u32 %s577, 1
        %s1566 = smul.addr %s1565, 8
        %s1567 = scalar_lea.vmem [#allocation17], %s1566
        %s1568 = sand.u32 %s607, 1
        %s1569 = scalar_lea.sflag [#allocation19], %s1568
        %s1570 = sand.u32 %s607, 1
        %s1571 = smul.addr %s1570, 16
        %s1572 = scalar_lea.vmem [#allocation18], %s1571
        // Predicated region
        $region149: #{tpu_custom_call.1} parent=99 // pred_check
          %p1573 = pneg %p587
        $region150: #{tpu_custom_call.1} parent=99 // pred_check_branch
          %1575 = sbr.rel (%p1573) target = $region152
        $region151: #{tpu_custom_call.1} parent=99 // pred_region
          %1577 = vsyncadd %s1564, 0
          %s1578 = sadd.s32 %s52, %s51
          %s1579 = smul.addr %s1578, 8
          %s1580 = scalar_lea.hbm %s20, %s1579
          %s1582 = sshll.u32 %s1567, 4
          %s1583 = int_to_ptr.vmem [resolvable:$true] %s1582
          %s1584 = sshll.u32 %s1580, 4
          %s1585 = int_to_ptr.hbm [resolvable:$true] %s1584
          %1587 = dma.vmem_to_hbm [thread:$0]  %s1583, 128, %s1585, %s1564
        $region152: #{tpu_custom_call.1} parent=99 // pred_fallthru
          _
        // Predicated region
        $region153: #{tpu_custom_call.1} parent=99 // pred_check
          %p1588 = pneg %p617
        $region154: #{tpu_custom_call.1} parent=99 // pred_check_branch
          %1590 = sbr.rel (%p1588) target = $region156
        $region155: #{tpu_custom_call.1} parent=99 // pred_region
          %1592 = vsyncadd %s1569, 0
          %s1593 = smul.addr %s53, 2
          %s1594 = sadd.s32 %s52, %s1593
          %s1595 = smul.addr %s51, 4
          %s1596 = sadd.s32 %s1594, %s1595
          %s1597 = smul.addr %s1596, 8
          %s1598 = scalar_lea.hbm %s21, %s1597
          %s1599 = sshll.u32 %s1572, 4
          %s1600 = int_to_ptr.vmem [resolvable:$true] %s1599
          %s1601 = sshll.u32 %s1598, 4
          %s1602 = int_to_ptr.hbm [resolvable:$true] %s1601
          %1607 = dma.vmem_to_hbm [thread:$0]  %s1600, 256, %s1602, %s1569, 128, 128, 8
        $region156: #{tpu_custom_call.1} parent=99 // pred_fallthru
          _
      $region100: #{tpu_custom_call.1} parent=5 // pred_fallthru
        _
      %p1608 = scmp.le.s32.totalorder 2, %s41
      // Predicated region
      $region157: #{tpu_custom_call.1} parent=5 // pred_check
        %p1609 = pneg %p1608
      $region158: #{tpu_custom_call.1} parent=5 // pred_check_branch
        %1611 = sbr.rel (%p1609) target = $region160
      $region159: #{tpu_custom_call.1} parent=5 // pred_region
        %s1612 = ssub.s32 %s41, 2
        // Predicated region
        $region161: #{tpu_custom_call.1} parent=159 // pred_check
          %p1613 = pneg %p593
        $region162: #{tpu_custom_call.1} parent=159 // pred_check_branch
          %1615 = sbr.rel (%p1613) target = $region164
        $region163: #{tpu_custom_call.1} parent=159 // pred_region
          %s1616 = sand.u32 %s578, 1
          %s1617 = scalar_lea.sflag [#allocation5], %s1616
          %s1618 = sand.u32 %s578, 1
          %s1619 = smul.addr %s1618, 8
          %s1620 = scalar_lea.vmem [#allocation17], %s1619
          %1622 = dma.done %s1617, 128
        $region164: #{tpu_custom_call.1} parent=159 // pred_fallthru
          _
        // Predicated region
        $region165: #{tpu_custom_call.1} parent=159 // pred_check
          %p1623 = pneg %p623
        $region166: #{tpu_custom_call.1} parent=159 // pred_check_branch
          %1625 = sbr.rel (%p1623) target = $region168
        $region167: #{tpu_custom_call.1} parent=159 // pred_region
          %s1626 = sand.u32 %s608, 1
          %s1627 = scalar_lea.sflag [#allocation19], %s1626
          %s1628 = sand.u32 %s608, 1
          %s1629 = smul.addr %s1628, 16
          %s1630 = scalar_lea.vmem [#allocation18], %s1629
          %1632 = dma.done %s1627, 256
        $region168: #{tpu_custom_call.1} parent=159 // pred_fallthru
          _
      $region160: #{tpu_custom_call.1} parent=5 // pred_fallthru
        _
    $region6: #{tpu_custom_call.1} parent=1 // loop_footer
      %s45 = sadd.s32 1, %s41
    $region7: #{tpu_custom_call.1} parent=1 // loop_footer_branch
      %40 = sbr.rel target = $region3
    $region8: #{tpu_custom_call.1} parent=1 // loop_exit
      _
    %1633 = vsyncpa [#allocation4], 1
    %s1634 = scalar_lea.sflag [#allocation4], 1
    %1635 = vsyncpa %s1634, 1
    %1636 = vsyncpa [#allocation7], 1
    %s1637 = scalar_lea.sflag [#allocation7], 1
    %1638 = vsyncpa %s1637, 1
    %1639 = vsyncpa [#allocation10], 1
    %1640 = vsyncpa [#allocation5], 1
    %s1641 = scalar_lea.sflag [#allocation5], 1
    %1642 = vsyncpa %s1641, 1
    %1643 = vsyncpa [#allocation19], 1
    %s1644 = scalar_lea.sflag [#allocation19], 1
    %1645 = vsyncpa %s1644, 1

</llo_original>
